<compile_context>
chip_gen: v7x
topology: tpu7x:2x2x1
jax: 0.10.0
libtpu: 0.0.40
codegen_flags: <defaults>
</compile_context>

<pallas_src>
import functools

import jax
import jax.numpy as jnp
from jax.experimental import pallas as pl
from jax.experimental.pallas import tpu as pltpu


def _round_up(x, m):
    return (x + m - 1) // m * m


def _nbytes(shape, itemsize):
    n = 1
    for s in shape:
        n *= int(s)
    return n * itemsize


_TIME_CHUNK = 64            # time chunk of the hoisted hidden-layer projection
_UNROLL = 8                 # recurrence unroll factor
_GATE_PERM = (0, 1, 3, 2)   # PyTorch [i, f, g, o] -> packed [i, f, o, g]


# ----------------------------------------------------------------------------
# Fused kernel: all LSTM layers + final FC in one grid-less invocation.
# ----------------------------------------------------------------------------
def _make_fused_kernel(num_layers, T, Bp, H, Hp, G, chunks, unroll):
    three_h = 3 * H

    def kernel(*args):
        g0_ref = args[0]                       # (T, Bp, G)  f32 layer-0 gates
        whh0_ref = args[1]                     # (Hp, G)     bf16
        ptr = 2
        hidden = []
        for _ in range(num_layers - 1):
            hidden.append((args[ptr], args[ptr + 1], args[ptr + 2]))
            ptr += 3
        fcw_ref = args[ptr]                    # (Hp, Op)    bf16
        fcb_ref = args[ptr + 1]                # (1, Op)     f32
        out_ref = args[ptr + 2]                # (Bp, Op)    f32
        seq_scr = args[ptr + 3]                # (T, Bp, Hp) f32 inter-layer acts
        gates_scr = args[ptr + 4]              # (Tc, Bp, G) f32 chunked x-proj

        zeros_tail = None
        if Hp > H:
            # lanes [H, Hp) of h stay exactly 0 -> padded weight rows are inert
            zeros_tail = jnp.zeros((Bp, Hp - H), jnp.float32)

        def run_chunk(read_gates, whh_ref, n_steps, t_base, h, c, write_seq):
            def step(t, carry):
                h, c = carry
                # W_hh read from VMEM every step (not pinned across the unroll)
                z = read_gates(t) + jnp.dot(
                    h, whh_ref[...], preferred_element_type=jnp.float32)
                # gate order [i, f, o, g]: one sigmoid stream + one tanh stream
                sfo = jax.nn.sigmoid(z[:, :three_h])
                g_g = jnp.tanh(z[:, three_h:4 * H])
                i_g = sfo[:, 0:H]
                f_g = sfo[:, H:2 * H]
                o_g = sfo[:, 2 * H:three_h]
                c_new = f_g * c + i_g * g_g            # f32 elementwise, width H
                h_new = o_g * jnp.tanh(c_new)          # f32, width H
                if zeros_tail is not None:
                    h_pad = jnp.concatenate([h_new, zeros_tail], axis=1)
                else:
                    h_pad = h_new
                if write_seq:
                    seq_scr[t_base + t] = h_pad
                return h_pad.astype(jnp.bfloat16), c_new

            return jax.lax.fori_loop(0, n_steps, step, (h, c), unroll=unroll)

        h0 = jnp.zeros((Bp, Hp), jnp.bfloat16)
        c0 = jnp.zeros((Bp, H), jnp.float32)

        # ---- layer 0: gates precomputed in the wrapper (x @ W_ih0 + b0) ----
        h, c = run_chunk(lambda t: g0_ref[t], whh0_ref, T, 0, h0, c0,
                         write_seq=num_layers > 1)

        # ---- layers 1..L-1: chunked hoisted projection + serial recurrence --
        for li, (wih_ref, whh_ref, b_ref) in enumerate(hidden):
            is_last = li == num_layers - 2
            h, c = h0, c0
            for (t0, length) in chunks:
                x_chunk = (seq_scr[t0:t0 + length]
                           .reshape(length * Bp, Hp).astype(jnp.bfloat16))
                gx = jnp.dot(x_chunk, wih_ref[...],
                             preferred_element_type=jnp.float32) + b_ref[...]
                gates_scr[0:length] = gx.reshape(length, Bp, G)
                h, c = run_chunk(lambda t: gates_scr[t], whh_ref, length, t0,
                                 h, c, write_seq=not is_last)

        # ---- final FC on the last hidden state (lane-dense output slab) ----
        out_ref[...] = (
            jnp.dot(h, fcw_ref[...], preferred_element_type=jnp.float32)
            + fcb_ref[...])

    return kernel


# ----------------------------------------------------------------------------
# Wrapper: pack/pad weights, precompute layer-0 gates, call the kernel.
# ----------------------------------------------------------------------------
@functools.partial(jax.jit, static_argnames=("num_layers",))
def stock_lstm_forward(x, params, num_layers):
    B, T, D = x.shape
    H = params["lstm"][0]["whh_t"].shape[0]
    O = params["fc"]["w_t"].shape[1]

    Bp = _round_up(B, 8)          # sublane-dense batch
    Hp = _round_up(H, 128)        # lane-dense hidden width (contraction dims)
    G = _round_up(4 * H, 128)     # packed gate width (gate stride == H)
    Op = _round_up(O, 128)        # lane-dense FC output

    # static time chunking of the hoisted hidden-layer input projection
    chunks = []
    t0 = 0
    while t0 < T:
        length = min(_TIME_CHUNK, T - t0)
        chunks.append((t0, length))
        t0 += length
    chunks = tuple(chunks)
    tc_max = max(length for _, length in chunks)
    unroll = max(1, min(_UNROLL, T))

    perm = jnp.array(_GATE_PERM)

    def pack_gate_mat(w, rows_to):
        # (r, 4H) -> (rows_to, G) bf16, gate order [i, f, o, g], zero padding.
        r = w.shape[0]
        w4 = w.reshape(r, 4, H)[:, perm, :].reshape(r, 4 * H)
        w4 = jnp.pad(w4, ((0, rows_to - r), (0, G - 4 * H)))
        return w4.astype(jnp.bfloat16)

    def pack_gate_bias(b):
        b4 = b.reshape(1, 4, H)[:, perm, :].reshape(1, 4 * H)
        return jnp.pad(b4, ((0, 0), (0, G - 4 * H))).astype(jnp.float32)

    # ---- layer-0 input projection done by plain XLA (D << 128) -------------
    p0 = params["lstm"][0]
    g0 = jnp.einsum("btd,dg->btg", x.astype(jnp.float32), p0["wih_t"]) + p0["bias"]
    g0 = g0.reshape(B, T, 4, H)[:, :, perm, :].reshape(B, T, 4 * H)
    g0 = jnp.pad(g0, ((0, Bp - B), (0, 0), (0, G - 4 * H)))
    g0 = jnp.transpose(g0, (1, 0, 2))                     # (T, Bp, G) f32

    kernel_inputs = [g0, pack_gate_mat(p0["whh_t"], Hp)]
    for layer in range(1, num_layers):
        p = params["lstm"][layer]
        kernel_inputs += [
            pack_gate_mat(p["wih_t"], Hp),
            pack_gate_mat(p["whh_t"], Hp),
            pack_gate_bias(p["bias"]),
        ]
    fcw = jnp.pad(params["fc"]["w_t"],
                  ((0, Hp - H), (0, Op - O))).astype(jnp.bfloat16)
    fcb = jnp.pad(params["fc"]["b"], ((0, 0), (0, Op - O))).astype(jnp.float32)
    kernel_inputs += [fcw, fcb]

    # VMEM budget: every operand + both scratches + output, with headroom.
    vmem_bytes = (
        _nbytes((T, Bp, G), 4)                                   # g0
        + _nbytes((Hp, G), 2) * (1 + 2 * (num_layers - 1))       # whh/wih
        + _nbytes((1, G), 4) * (num_layers - 1)                  # biases
        + _nbytes((Hp, Op), 2) + _nbytes((1, Op), 4)             # fc
        + _nbytes((Bp, Op), 4)                                   # out
        + _nbytes((T, Bp, Hp), 4)                                # seq_scr
        + _nbytes((tc_max, Bp, G), 4)                            # gates_scr
    )
    vmem_limit = int(min(128 * 1024 * 1024, 2 * vmem_bytes + (8 << 20)))

    vmem_spec = pl.BlockSpec(memory_space=pltpu.MemorySpace.VMEM)
    out_padded = pl.pallas_call(
        _make_fused_kernel(num_layers, T, Bp, H, Hp, G, chunks, unroll),
        out_shape=jax.ShapeDtypeStruct((Bp, Op), jnp.float32),
        in_specs=[vmem_spec] * len(kernel_inputs),
        out_specs=vmem_spec,
        scratch_shapes=[
            pltpu.VMEM((T, Bp, Hp), jnp.float32),       # inter-layer sequence
            pltpu.VMEM((tc_max, Bp, G), jnp.float32),   # chunked input gates
        ],
        compiler_params=pltpu.CompilerParams(vmem_limit_bytes=vmem_limit),
    )(*kernel_inputs)

    return out_padded[:B, :O]


# ----------------------------------------------------------------------------
# Parameter init (PyTorch-style shapes / U(-1/sqrt(H), 1/sqrt(H)) init).
# ----------------------------------------------------------------------------
def init_params(key, input_size, hidden_size, num_layers, output_size):
    bound = 1.0 / jnp.sqrt(jnp.float32(hidden_size))
    keys = jax.random.split(key, num_layers * 4 + 2)
    lstm_params = []
    for layer in range(num_layers):
        d_in = input_size if layer == 0 else hidden_size
        k0, k1, k2, k3 = keys[layer * 4: layer * 4 + 4]
        w_ih = jax.random.uniform(k0, (4 * hidden_size, d_in), jnp.float32,
                                  -bound, bound)
        w_hh = jax.random.uniform(k1, (4 * hidden_size, hidden_size),
                                  jnp.float32, -bound, bound)
        b_ih = jax.random.uniform(k2, (4 * hidden_size,), jnp.float32,
                                  -bound, bound)
        b_hh = jax.random.uniform(k3, (4 * hidden_size,), jnp.float32,
                                  -bound, bound)
        lstm_params.append({
            "wih_t": w_ih.T,                     # (D_in, 4H), PyTorch gate order
            "whh_t": w_hh.T,                     # (H, 4H)
            "bias": (b_ih + b_hh)[None, :],      # (1, 4H)
        })
    kw, kb = keys[-2], keys[-1]
    fc_w = jax.random.uniform(kw, (output_size, hidden_size), jnp.float32,
                              -bound, bound)
    fc_b = jax.random.uniform(kb, (output_size,), jnp.float32, -bound, bound)
    return {"lstm": lstm_params, "fc": {"w_t": fc_w.T, "b": fc_b[None, :]}}


# ----------------------------------------------------------------------------
# Pure-JAX reference (lax.scan, f32) for correctness checking.
# ----------------------------------------------------------------------------
def reference_forward(x, params, num_layers):
    h_seq = x
    H = params["lstm"][0]["whh_t"].shape[0]
    B = x.shape[0]
    for layer in range(num_layers):
        p = params["lstm"][layer]

        def step(carry, x_t):
            h, c = carry
            gates = x_t @ p["wih_t"] + h @ p["whh_t"] + p["bias"]
            i = jax.nn.sigmoid(gates[:, 0 * H:1 * H])
            f = jax.nn.sigmoid(gates[:, 1 * H:2 * H])
            g = jnp.tanh(gates[:, 2 * H:3 * H])
            o = jax.nn.sigmoid(gates[:, 3 * H:4 * H])
            c_new = f * c + i * g
            h_new = o * jnp.tanh(c_new)
            return (h_new, c_new), h_new

        init = (jnp.zeros((B, H), jnp.float32), jnp.zeros((B, H), jnp.float32))
        _, ys = jax.lax.scan(step, init, jnp.swapaxes(h_seq, 0, 1))
        h_seq = jnp.swapaxes(ys, 0, 1)
    return h_seq[:, -1, :] @ params["fc"]["w_t"] + params["fc"]["b"]


if __name__ == "__main__":
    # Shapes consistent with StockLSTM(input_size=8, hidden_size=32,
    # num_layers=2, output_size=1, drop_out=0.0, bidirectional=False)
    batch, seq = 2, 8
    input_size, hidden_size, num_layers, output_size = 8, 32, 2, 1

    key = jax.random.PRNGKey(0)
    k_x, k_p = jax.random.split(key)
    x = jax.random.normal(k_x, (batch, seq, input_size), jnp.float32)
    params = init_params(k_p, input_size, hidden_size, num_layers, output_size)

    out = stock_lstm_forward(x, params, num_layers)
    out = jax.block_until_ready(out)

    ref = reference_forward(x, params, num_layers)
    assert out.shape == (batch, output_size), out.shape
    # bf16 matmuls in the kernel vs f32 reference -> relaxed tolerance.
    assert jnp.allclose(out, ref, atol=2e-2, rtol=2e-2), (out, ref)

    print("KERNEL_OK")
</pallas_src>

<mosaic_0001>
module attributes {stable_mosaic.version = 11 : i64} {
  func.func @kernel(%arg0: memref<8x8x128xf32, #tpu.memory_space<vmem>>, %arg1: memref<128x128xbf16, #tpu.memory_space<vmem>>, %arg2: memref<128x128xbf16, #tpu.memory_space<vmem>>, %arg3: memref<128x128xbf16, #tpu.memory_space<vmem>>, %arg4: memref<1x128xf32, #tpu.memory_space<vmem>>, %arg5: memref<128x128xbf16, #tpu.memory_space<vmem>>, %arg6: memref<1x128xf32, #tpu.memory_space<vmem>>, %arg7: memref<8x128xf32, #tpu.memory_space<vmem>>, %arg8: memref<8x8x128xf32, #tpu.memory_space<vmem>>, %arg9: memref<8x8x128xf32, #tpu.memory_space<vmem>>) attributes {dimension_semantics = [], scalar_prefetch = 0 : i64, scratch_operands = 2 : i64, tpu.core_type = #tpu.core_type<tc>} {
    %cst = arith.constant 0.000000e+00 : f32
    %0 = vector.broadcast %cst : f32 to vector<8x96xf32>
    %cst_0 = arith.constant 0.000000e+00 : bf16
    %1 = vector.broadcast %cst_0 : bf16 to vector<8x128xbf16>
    %cst_1 = arith.constant 0.000000e+00 : f32
    %2 = vector.broadcast %cst_1 : f32 to vector<8x32xf32>
    %c0_i32 = arith.constant 0 : i32
    %3 = arith.index_cast %c0_i32 : i32 to index
    %c0 = arith.constant 0 : index
    %c0_2 = arith.constant 0 : index
    %4 = vector.load %arg0[%3, %c0, %c0_2] : memref<8x8x128xf32, #tpu.memory_space<vmem>>, vector<1x8x128xf32>
    %5 = vector.shape_cast %4 : vector<1x8x128xf32> to vector<8x128xf32>
    %c0_3 = arith.constant 0 : index
    %c0_4 = arith.constant 0 : index
    %6 = vector.load %arg1[%c0_3, %c0_4] : memref<128x128xbf16, #tpu.memory_space<vmem>>, vector<128x128xbf16>
    %cst_5 = arith.constant dense<0.000000e+00> : vector<8x128xf32>
    %7 = tpu.matmul %1, %6, %cst_5 {dimension_numbers = #tpu.dot_dimension_numbers<[1], [0], [0], [1], [0, 0, 1, 1], [], []>} : vector<8x128xbf16>, vector<128x128xbf16>, vector<8x128xf32> -> vector<8x128xf32>
    %8 = arith.addf %5, %7 : vector<8x128xf32>
    %9 = vector.extract_strided_slice %8 {offsets = [0, 0], sizes = [8, 96], strides = [1, 1]} : vector<8x128xf32> to vector<8x96xf32>
    %10 = arith.negf %9 : vector<8x96xf32>
    %11 = math.exp %10 : vector<8x96xf32>
    %cst_6 = arith.constant 1.000000e+00 : f32
    %12 = vector.broadcast %cst_6 : f32 to vector<8x96xf32>
    %13 = arith.addf %12, %11 : vector<8x96xf32>
    %14 = arith.divf %12, %13 : vector<8x96xf32>
    %15 = vector.extract_strided_slice %8 {offsets = [0, 96], sizes = [8, 32], strides = [1, 1]} : vector<8x128xf32> to vector<8x32xf32>
    %16 = math.tanh %15 : vector<8x32xf32>
    %17 = vector.extract_strided_slice %14 {offsets = [0, 0], sizes = [8, 32], strides = [1, 1]} : vector<8x96xf32> to vector<8x32xf32>
    %18 = vector.extract_strided_slice %14 {offsets = [0, 32], sizes = [8, 32], strides = [1, 1]} : vector<8x96xf32> to vector<8x32xf32>
    %19 = vector.extract_strided_slice %14 {offsets = [0, 64], sizes = [8, 32], strides = [1, 1]} : vector<8x96xf32> to vector<8x32xf32>
    %20 = arith.mulf %18, %2 : vector<8x32xf32>
    %21 = arith.mulf %17, %16 : vector<8x32xf32>
    %22 = arith.addf %20, %21 : vector<8x32xf32>
    %23 = math.tanh %22 : vector<8x32xf32>
    %24 = arith.mulf %19, %23 : vector<8x32xf32>
    %25 = tpu.concatenate %24, %0 in 1 : vector<8x32xf32>, vector<8x96xf32> -> vector<8x128xf32>
    %c0_i32_7 = arith.constant 0 : i32
    %26 = arith.addi %c0_i32_7, %c0_i32 : i32
    %27 = arith.index_cast %26 : i32 to index
    %c0_8 = arith.constant 0 : index
    %c0_9 = arith.constant 0 : index
    %28 = vector.load %arg8[%27, %c0_8, %c0_9] : memref<8x8x128xf32, #tpu.memory_space<vmem>>, vector<1x8x128xf32>
    %29 = vector.shape_cast %28 : vector<1x8x128xf32> to vector<8x128xf32>
    %30 = vector.shape_cast %25 : vector<8x128xf32> to vector<1x8x128xf32>
    tpu.vector_store %arg8[%27, %c0_8, %c0_9], %30 {strides = array<i32>} : memref<8x8x128xf32, #tpu.memory_space<vmem>>, vector<1x8x128xf32>,
    %31 = arith.truncf %25 : vector<8x128xf32> to vector<8x128xbf16>
    %c1_i32 = arith.constant 1 : i32
    %32 = arith.index_cast %c1_i32 : i32 to index
    %c0_10 = arith.constant 0 : index
    %c0_11 = arith.constant 0 : index
    %33 = vector.load %arg0[%32, %c0_10, %c0_11] : memref<8x8x128xf32, #tpu.memory_space<vmem>>, vector<1x8x128xf32>
    %34 = vector.shape_cast %33 : vector<1x8x128xf32> to vector<8x128xf32>
    %c0_12 = arith.constant 0 : index
    %c0_13 = arith.constant 0 : index
    %35 = vector.load %arg1[%c0_12, %c0_13] : memref<128x128xbf16, #tpu.memory_space<vmem>>, vector<128x128xbf16>
    %cst_14 = arith.constant dense<0.000000e+00> : vector<8x128xf32>
    %36 = tpu.matmul %31, %35, %cst_14 {dimension_numbers = #tpu.dot_dimension_numbers<[1], [0], [0], [1], [0, 0, 1, 1], [], []>} : vector<8x128xbf16>, vector<128x128xbf16>, vector<8x128xf32> -> vector<8x128xf32>
    %37 = arith.addf %34, %36 : vector<8x128xf32>
    %38 = vector.extract_strided_slice %37 {offsets = [0, 0], sizes = [8, 96], strides = [1, 1]} : vector<8x128xf32> to vector<8x96xf32>
    %39 = arith.negf %38 : vector<8x96xf32>
    %40 = math.exp %39 : vector<8x96xf32>
    %cst_15 = arith.constant 1.000000e+00 : f32
    %41 = vector.broadcast %cst_15 : f32 to vector<8x96xf32>
    %42 = arith.addf %41, %40 : vector<8x96xf32>
    %43 = arith.divf %41, %42 : vector<8x96xf32>
    %44 = vector.extract_strided_slice %37 {offsets = [0, 96], sizes = [8, 32], strides = [1, 1]} : vector<8x128xf32> to vector<8x32xf32>
    %45 = math.tanh %44 : vector<8x32xf32>
    %46 = vector.extract_strided_slice %43 {offsets = [0, 0], sizes = [8, 32], strides = [1, 1]} : vector<8x96xf32> to vector<8x32xf32>
    %47 = vector.extract_strided_slice %43 {offsets = [0, 32], sizes = [8, 32], strides = [1, 1]} : vector<8x96xf32> to vector<8x32xf32>
    %48 = vector.extract_strided_slice %43 {offsets = [0, 64], sizes = [8, 32], strides = [1, 1]} : vector<8x96xf32> to vector<8x32xf32>
    %49 = arith.mulf %47, %22 : vector<8x32xf32>
    %50 = arith.mulf %46, %45 : vector<8x32xf32>
    %51 = arith.addf %49, %50 : vector<8x32xf32>
    %52 = math.tanh %51 : vector<8x32xf32>
    %53 = arith.mulf %48, %52 : vector<8x32xf32>
    %54 = tpu.concatenate %53, %0 in 1 : vector<8x32xf32>, vector<8x96xf32> -> vector<8x128xf32>
    %c0_i32_16 = arith.constant 0 : i32
    %55 = arith.addi %c0_i32_16, %c1_i32 : i32
    %56 = arith.index_cast %55 : i32 to index
    %c0_17 = arith.constant 0 : index
    %c0_18 = arith.constant 0 : index
    %57 = vector.load %arg8[%56, %c0_17, %c0_18] : memref<8x8x128xf32, #tpu.memory_space<vmem>>, vector<1x8x128xf32>
    %58 = vector.shape_cast %57 : vector<1x8x128xf32> to vector<8x128xf32>
    %59 = vector.shape_cast %54 : vector<8x128xf32> to vector<1x8x128xf32>
    tpu.vector_store %arg8[%56, %c0_17, %c0_18], %59 {strides = array<i32>} : memref<8x8x128xf32, #tpu.memory_space<vmem>>, vector<1x8x128xf32>,
    %60 = arith.truncf %54 : vector<8x128xf32> to vector<8x128xbf16>
    %c2_i32 = arith.constant 2 : i32
    %61 = arith.index_cast %c2_i32 : i32 to index
    %c0_19 = arith.constant 0 : index
    %c0_20 = arith.constant 0 : index
    %62 = vector.load %arg0[%61, %c0_19, %c0_20] : memref<8x8x128xf32, #tpu.memory_space<vmem>>, vector<1x8x128xf32>
    %63 = vector.shape_cast %62 : vector<1x8x128xf32> to vector<8x128xf32>
    %c0_21 = arith.constant 0 : index
    %c0_22 = arith.constant 0 : index
    %64 = vector.load %arg1[%c0_21, %c0_22] : memref<128x128xbf16, #tpu.memory_space<vmem>>, vector<128x128xbf16>
    %cst_23 = arith.constant dense<0.000000e+00> : vector<8x128xf32>
    %65 = tpu.matmul %60, %64, %cst_23 {dimension_numbers = #tpu.dot_dimension_numbers<[1], [0], [0], [1], [0, 0, 1, 1], [], []>} : vector<8x128xbf16>, vector<128x128xbf16>, vector<8x128xf32> -> vector<8x128xf32>
    %66 = arith.addf %63, %65 : vector<8x128xf32>
    %67 = vector.extract_strided_slice %66 {offsets = [0, 0], sizes = [8, 96], strides = [1, 1]} : vector<8x128xf32> to vector<8x96xf32>
    %68 = arith.negf %67 : vector<8x96xf32>
    %69 = math.exp %68 : vector<8x96xf32>
    %cst_24 = arith.constant 1.000000e+00 : f32
    %70 = vector.broadcast %cst_24 : f32 to vector<8x96xf32>
    %71 = arith.addf %70, %69 : vector<8x96xf32>
    %72 = arith.divf %70, %71 : vector<8x96xf32>
    %73 = vector.extract_strided_slice %66 {offsets = [0, 96], sizes = [8, 32], strides = [1, 1]} : vector<8x128xf32> to vector<8x32xf32>
    %74 = math.tanh %73 : vector<8x32xf32>
    %75 = vector.extract_strided_slice %72 {offsets = [0, 0], sizes = [8, 32], strides = [1, 1]} : vector<8x96xf32> to vector<8x32xf32>
    %76 = vector.extract_strided_slice %72 {offsets = [0, 32], sizes = [8, 32], strides = [1, 1]} : vector<8x96xf32> to vector<8x32xf32>
    %77 = vector.extract_strided_slice %72 {offsets = [0, 64], sizes = [8, 32], strides = [1, 1]} : vector<8x96xf32> to vector<8x32xf32>
    %78 = arith.mulf %76, %51 : vector<8x32xf32>
    %79 = arith.mulf %75, %74 : vector<8x32xf32>
    %80 = arith.addf %78, %79 : vector<8x32xf32>
    %81 = math.tanh %80 : vector<8x32xf32>
    %82 = arith.mulf %77, %81 : vector<8x32xf32>
    %83 = tpu.concatenate %82, %0 in 1 : vector<8x32xf32>, vector<8x96xf32> -> vector<8x128xf32>
    %c0_i32_25 = arith.constant 0 : i32
    %84 = arith.addi %c0_i32_25, %c2_i32 : i32
    %85 = arith.index_cast %84 : i32 to index
    %c0_26 = arith.constant 0 : index
    %c0_27 = arith.constant 0 : index
    %86 = vector.load %arg8[%85, %c0_26, %c0_27] : memref<8x8x128xf32, #tpu.memory_space<vmem>>, vector<1x8x128xf32>
    %87 = vector.shape_cast %86 : vector<1x8x128xf32> to vector<8x128xf32>
    %88 = vector.shape_cast %83 : vector<8x128xf32> to vector<1x8x128xf32>
    tpu.vector_store %arg8[%85, %c0_26, %c0_27], %88 {strides = array<i32>} : memref<8x8x128xf32, #tpu.memory_space<vmem>>, vector<1x8x128xf32>,
    %89 = arith.truncf %83 : vector<8x128xf32> to vector<8x128xbf16>
    %c3_i32 = arith.constant 3 : i32
    %90 = arith.index_cast %c3_i32 : i32 to index
    %c0_28 = arith.constant 0 : index
    %c0_29 = arith.constant 0 : index
    %91 = vector.load %arg0[%90, %c0_28, %c0_29] : memref<8x8x128xf32, #tpu.memory_space<vmem>>, vector<1x8x128xf32>
    %92 = vector.shape_cast %91 : vector<1x8x128xf32> to vector<8x128xf32>
    %c0_30 = arith.constant 0 : index
    %c0_31 = arith.constant 0 : index
    %93 = vector.load %arg1[%c0_30, %c0_31] : memref<128x128xbf16, #tpu.memory_space<vmem>>, vector<128x128xbf16>
    %cst_32 = arith.constant dense<0.000000e+00> : vector<8x128xf32>
    %94 = tpu.matmul %89, %93, %cst_32 {dimension_numbers = #tpu.dot_dimension_numbers<[1], [0], [0], [1], [0, 0, 1, 1], [], []>} : vector<8x128xbf16>, vector<128x128xbf16>, vector<8x128xf32> -> vector<8x128xf32>
    %95 = arith.addf %92, %94 : vector<8x128xf32>
    %96 = vector.extract_strided_slice %95 {offsets = [0, 0], sizes = [8, 96], strides = [1, 1]} : vector<8x128xf32> to vector<8x96xf32>
    %97 = arith.negf %96 : vector<8x96xf32>
    %98 = math.exp %97 : vector<8x96xf32>
    %cst_33 = arith.constant 1.000000e+00 : f32
    %99 = vector.broadcast %cst_33 : f32 to vector<8x96xf32>
    %100 = arith.addf %99, %98 : vector<8x96xf32>
    %101 = arith.divf %99, %100 : vector<8x96xf32>
    %102 = vector.extract_strided_slice %95 {offsets = [0, 96], sizes = [8, 32], strides = [1, 1]} : vector<8x128xf32> to vector<8x32xf32>
    %103 = math.tanh %102 : vector<8x32xf32>
    %104 = vector.extract_strided_slice %101 {offsets = [0, 0], sizes = [8, 32], strides = [1, 1]} : vector<8x96xf32> to vector<8x32xf32>
    %105 = vector.extract_strided_slice %101 {offsets = [0, 32], sizes = [8, 32], strides = [1, 1]} : vector<8x96xf32> to vector<8x32xf32>
    %106 = vector.extract_strided_slice %101 {offsets = [0, 64], sizes = [8, 32], strides = [1, 1]} : vector<8x96xf32> to vector<8x32xf32>
    %107 = arith.mulf %105, %80 : vector<8x32xf32>
    %108 = arith.mulf %104, %103 : vector<8x32xf32>
    %109 = arith.addf %107, %108 : vector<8x32xf32>
    %110 = math.tanh %109 : vector<8x32xf32>
    %111 = arith.mulf %106, %110 : vector<8x32xf32>
    %112 = tpu.concatenate %111, %0 in 1 : vector<8x32xf32>, vector<8x96xf32> -> vector<8x128xf32>
    %c0_i32_34 = arith.constant 0 : i32
    %113 = arith.addi %c0_i32_34, %c3_i32 : i32
    %114 = arith.index_cast %113 : i32 to index
    %c0_35 = arith.constant 0 : index
    %c0_36 = arith.constant 0 : index
    %115 = vector.load %arg8[%114, %c0_35, %c0_36] : memref<8x8x128xf32, #tpu.memory_space<vmem>>, vector<1x8x128xf32>
    %116 = vector.shape_cast %115 : vector<1x8x128xf32> to vector<8x128xf32>
    %117 = vector.shape_cast %112 : vector<8x128xf32> to vector<1x8x128xf32>
    tpu.vector_store %arg8[%114, %c0_35, %c0_36], %117 {strides = array<i32>} : memref<8x8x128xf32, #tpu.memory_space<vmem>>, vector<1x8x128xf32>,
    %118 = arith.truncf %112 : vector<8x128xf32> to vector<8x128xbf16>
    %c4_i32 = arith.constant 4 : i32
    %119 = arith.index_cast %c4_i32 : i32 to index
    %c0_37 = arith.constant 0 : index
    %c0_38 = arith.constant 0 : index
    %120 = vector.load %arg0[%119, %c0_37, %c0_38] : memref<8x8x128xf32, #tpu.memory_space<vmem>>, vector<1x8x128xf32>
    %121 = vector.shape_cast %120 : vector<1x8x128xf32> to vector<8x128xf32>
    %c0_39 = arith.constant 0 : index
    %c0_40 = arith.constant 0 : index
    %122 = vector.load %arg1[%c0_39, %c0_40] : memref<128x128xbf16, #tpu.memory_space<vmem>>, vector<128x128xbf16>
    %cst_41 = arith.constant dense<0.000000e+00> : vector<8x128xf32>
    %123 = tpu.matmul %118, %122, %cst_41 {dimension_numbers = #tpu.dot_dimension_numbers<[1], [0], [0], [1], [0, 0, 1, 1], [], []>} : vector<8x128xbf16>, vector<128x128xbf16>, vector<8x128xf32> -> vector<8x128xf32>
    %124 = arith.addf %121, %123 : vector<8x128xf32>
    %125 = vector.extract_strided_slice %124 {offsets = [0, 0], sizes = [8, 96], strides = [1, 1]} : vector<8x128xf32> to vector<8x96xf32>
    %126 = arith.negf %125 : vector<8x96xf32>
    %127 = math.exp %126 : vector<8x96xf32>
    %cst_42 = arith.constant 1.000000e+00 : f32
    %128 = vector.broadcast %cst_42 : f32 to vector<8x96xf32>
    %129 = arith.addf %128, %127 : vector<8x96xf32>
    %130 = arith.divf %128, %129 : vector<8x96xf32>
    %131 = vector.extract_strided_slice %124 {offsets = [0, 96], sizes = [8, 32], strides = [1, 1]} : vector<8x128xf32> to vector<8x32xf32>
    %132 = math.tanh %131 : vector<8x32xf32>
    %133 = vector.extract_strided_slice %130 {offsets = [0, 0], sizes = [8, 32], strides = [1, 1]} : vector<8x96xf32> to vector<8x32xf32>
    %134 = vector.extract_strided_slice %130 {offsets = [0, 32], sizes = [8, 32], strides = [1, 1]} : vector<8x96xf32> to vector<8x32xf32>
    %135 = vector.extract_strided_slice %130 {offsets = [0, 64], sizes = [8, 32], strides = [1, 1]} : vector<8x96xf32> to vector<8x32xf32>
    %136 = arith.mulf %134, %109 : vector<8x32xf32>
    %137 = arith.mulf %133, %132 : vector<8x32xf32>
    %138 = arith.addf %136, %137 : vector<8x32xf32>
    %139 = math.tanh %138 : vector<8x32xf32>
    %140 = arith.mulf %135, %139 : vector<8x32xf32>
    %141 = tpu.concatenate %140, %0 in 1 : vector<8x32xf32>, vector<8x96xf32> -> vector<8x128xf32>
    %c0_i32_43 = arith.constant 0 : i32
    %142 = arith.addi %c0_i32_43, %c4_i32 : i32
    %143 = arith.index_cast %142 : i32 to index
    %c0_44 = arith.constant 0 : index
    %c0_45 = arith.constant 0 : index
    %144 = vector.load %arg8[%143, %c0_44, %c0_45] : memref<8x8x128xf32, #tpu.memory_space<vmem>>, vector<1x8x128xf32>
    %145 = vector.shape_cast %144 : vector<1x8x128xf32> to vector<8x128xf32>
    %146 = vector.shape_cast %141 : vector<8x128xf32> to vector<1x8x128xf32>
    tpu.vector_store %arg8[%143, %c0_44, %c0_45], %146 {strides = array<i32>} : memref<8x8x128xf32, #tpu.memory_space<vmem>>, vector<1x8x128xf32>,
    %147 = arith.truncf %141 : vector<8x128xf32> to vector<8x128xbf16>
    %c5_i32 = arith.constant 5 : i32
    %148 = arith.index_cast %c5_i32 : i32 to index
    %c0_46 = arith.constant 0 : index
    %c0_47 = arith.constant 0 : index
    %149 = vector.load %arg0[%148, %c0_46, %c0_47] : memref<8x8x128xf32, #tpu.memory_space<vmem>>, vector<1x8x128xf32>
    %150 = vector.shape_cast %149 : vector<1x8x128xf32> to vector<8x128xf32>
    %c0_48 = arith.constant 0 : index
    %c0_49 = arith.constant 0 : index
    %151 = vector.load %arg1[%c0_48, %c0_49] : memref<128x128xbf16, #tpu.memory_space<vmem>>, vector<128x128xbf16>
    %cst_50 = arith.constant dense<0.000000e+00> : vector<8x128xf32>
    %152 = tpu.matmul %147, %151, %cst_50 {dimension_numbers = #tpu.dot_dimension_numbers<[1], [0], [0], [1], [0, 0, 1, 1], [], []>} : vector<8x128xbf16>, vector<128x128xbf16>, vector<8x128xf32> -> vector<8x128xf32>
    %153 = arith.addf %150, %152 : vector<8x128xf32>
    %154 = vector.extract_strided_slice %153 {offsets = [0, 0], sizes = [8, 96], strides = [1, 1]} : vector<8x128xf32> to vector<8x96xf32>
    %155 = arith.negf %154 : vector<8x96xf32>
    %156 = math.exp %155 : vector<8x96xf32>
    %cst_51 = arith.constant 1.000000e+00 : f32
    %157 = vector.broadcast %cst_51 : f32 to vector<8x96xf32>
    %158 = arith.addf %157, %156 : vector<8x96xf32>
    %159 = arith.divf %157, %158 : vector<8x96xf32>
    %160 = vector.extract_strided_slice %153 {offsets = [0, 96], sizes = [8, 32], strides = [1, 1]} : vector<8x128xf32> to vector<8x32xf32>
    %161 = math.tanh %160 : vector<8x32xf32>
    %162 = vector.extract_strided_slice %159 {offsets = [0, 0], sizes = [8, 32], strides = [1, 1]} : vector<8x96xf32> to vector<8x32xf32>
    %163 = vector.extract_strided_slice %159 {offsets = [0, 32], sizes = [8, 32], strides = [1, 1]} : vector<8x96xf32> to vector<8x32xf32>
    %164 = vector.extract_strided_slice %159 {offsets = [0, 64], sizes = [8, 32], strides = [1, 1]} : vector<8x96xf32> to vector<8x32xf32>
    %165 = arith.mulf %163, %138 : vector<8x32xf32>
    %166 = arith.mulf %162, %161 : vector<8x32xf32>
    %167 = arith.addf %165, %166 : vector<8x32xf32>
    %168 = math.tanh %167 : vector<8x32xf32>
    %169 = arith.mulf %164, %168 : vector<8x32xf32>
    %170 = tpu.concatenate %169, %0 in 1 : vector<8x32xf32>, vector<8x96xf32> -> vector<8x128xf32>
    %c0_i32_52 = arith.constant 0 : i32
    %171 = arith.addi %c0_i32_52, %c5_i32 : i32
    %172 = arith.index_cast %171 : i32 to index
    %c0_53 = arith.constant 0 : index
    %c0_54 = arith.constant 0 : index
    %173 = vector.load %arg8[%172, %c0_53, %c0_54] : memref<8x8x128xf32, #tpu.memory_space<vmem>>, vector<1x8x128xf32>
    %174 = vector.shape_cast %173 : vector<1x8x128xf32> to vector<8x128xf32>
    %175 = vector.shape_cast %170 : vector<8x128xf32> to vector<1x8x128xf32>
    tpu.vector_store %arg8[%172, %c0_53, %c0_54], %175 {strides = array<i32>} : memref<8x8x128xf32, #tpu.memory_space<vmem>>, vector<1x8x128xf32>,
    %176 = arith.truncf %170 : vector<8x128xf32> to vector<8x128xbf16>
    %c6_i32 = arith.constant 6 : i32
    %177 = arith.index_cast %c6_i32 : i32 to index
    %c0_55 = arith.constant 0 : index
    %c0_56 = arith.constant 0 : index
    %178 = vector.load %arg0[%177, %c0_55, %c0_56] : memref<8x8x128xf32, #tpu.memory_space<vmem>>, vector<1x8x128xf32>
    %179 = vector.shape_cast %178 : vector<1x8x128xf32> to vector<8x128xf32>
    %c0_57 = arith.constant 0 : index
    %c0_58 = arith.constant 0 : index
    %180 = vector.load %arg1[%c0_57, %c0_58] : memref<128x128xbf16, #tpu.memory_space<vmem>>, vector<128x128xbf16>
    %cst_59 = arith.constant dense<0.000000e+00> : vector<8x128xf32>
    %181 = tpu.matmul %176, %180, %cst_59 {dimension_numbers = #tpu.dot_dimension_numbers<[1], [0], [0], [1], [0, 0, 1, 1], [], []>} : vector<8x128xbf16>, vector<128x128xbf16>, vector<8x128xf32> -> vector<8x128xf32>
    %182 = arith.addf %179, %181 : vector<8x128xf32>
    %183 = vector.extract_strided_slice %182 {offsets = [0, 0], sizes = [8, 96], strides = [1, 1]} : vector<8x128xf32> to vector<8x96xf32>
    %184 = arith.negf %183 : vector<8x96xf32>
    %185 = math.exp %184 : vector<8x96xf32>
    %cst_60 = arith.constant 1.000000e+00 : f32
    %186 = vector.broadcast %cst_60 : f32 to vector<8x96xf32>
    %187 = arith.addf %186, %185 : vector<8x96xf32>
    %188 = arith.divf %186, %187 : vector<8x96xf32>
    %189 = vector.extract_strided_slice %182 {offsets = [0, 96], sizes = [8, 32], strides = [1, 1]} : vector<8x128xf32> to vector<8x32xf32>
    %190 = math.tanh %189 : vector<8x32xf32>
    %191 = vector.extract_strided_slice %188 {offsets = [0, 0], sizes = [8, 32], strides = [1, 1]} : vector<8x96xf32> to vector<8x32xf32>
    %192 = vector.extract_strided_slice %188 {offsets = [0, 32], sizes = [8, 32], strides = [1, 1]} : vector<8x96xf32> to vector<8x32xf32>
    %193 = vector.extract_strided_slice %188 {offsets = [0, 64], sizes = [8, 32], strides = [1, 1]} : vector<8x96xf32> to vector<8x32xf32>
    %194 = arith.mulf %192, %167 : vector<8x32xf32>
    %195 = arith.mulf %191, %190 : vector<8x32xf32>
    %196 = arith.addf %194, %195 : vector<8x32xf32>
    %197 = math.tanh %196 : vector<8x32xf32>
    %198 = arith.mulf %193, %197 : vector<8x32xf32>
    %199 = tpu.concatenate %198, %0 in 1 : vector<8x32xf32>, vector<8x96xf32> -> vector<8x128xf32>
    %c0_i32_61 = arith.constant 0 : i32
    %200 = arith.addi %c0_i32_61, %c6_i32 : i32
    %201 = arith.index_cast %200 : i32 to index
    %c0_62 = arith.constant 0 : index
    %c0_63 = arith.constant 0 : index
    %202 = vector.load %arg8[%201, %c0_62, %c0_63] : memref<8x8x128xf32, #tpu.memory_space<vmem>>, vector<1x8x128xf32>
    %203 = vector.shape_cast %202 : vector<1x8x128xf32> to vector<8x128xf32>
    %204 = vector.shape_cast %199 : vector<8x128xf32> to vector<1x8x128xf32>
    tpu.vector_store %arg8[%201, %c0_62, %c0_63], %204 {strides = array<i32>} : memref<8x8x128xf32, #tpu.memory_space<vmem>>, vector<1x8x128xf32>,
    %205 = arith.truncf %199 : vector<8x128xf32> to vector<8x128xbf16>
    %c7_i32 = arith.constant 7 : i32
    %206 = arith.index_cast %c7_i32 : i32 to index
    %c0_64 = arith.constant 0 : index
    %c0_65 = arith.constant 0 : index
    %207 = vector.load %arg0[%206, %c0_64, %c0_65] : memref<8x8x128xf32, #tpu.memory_space<vmem>>, vector<1x8x128xf32>
    %208 = vector.shape_cast %207 : vector<1x8x128xf32> to vector<8x128xf32>
    %c0_66 = arith.constant 0 : index
    %c0_67 = arith.constant 0 : index
    %209 = vector.load %arg1[%c0_66, %c0_67] : memref<128x128xbf16, #tpu.memory_space<vmem>>, vector<128x128xbf16>
    %cst_68 = arith.constant dense<0.000000e+00> : vector<8x128xf32>
    %210 = tpu.matmul %205, %209, %cst_68 {dimension_numbers = #tpu.dot_dimension_numbers<[1], [0], [0], [1], [0, 0, 1, 1], [], []>} : vector<8x128xbf16>, vector<128x128xbf16>, vector<8x128xf32> -> vector<8x128xf32>
    %211 = arith.addf %208, %210 : vector<8x128xf32>
    %212 = vector.extract_strided_slice %211 {offsets = [0, 0], sizes = [8, 96], strides = [1, 1]} : vector<8x128xf32> to vector<8x96xf32>
    %213 = arith.negf %212 : vector<8x96xf32>
    %214 = math.exp %213 : vector<8x96xf32>
    %cst_69 = arith.constant 1.000000e+00 : f32
    %215 = vector.broadcast %cst_69 : f32 to vector<8x96xf32>
    %216 = arith.addf %215, %214 : vector<8x96xf32>
    %217 = arith.divf %215, %216 : vector<8x96xf32>
    %218 = vector.extract_strided_slice %211 {offsets = [0, 96], sizes = [8, 32], strides = [1, 1]} : vector<8x128xf32> to vector<8x32xf32>
    %219 = math.tanh %218 : vector<8x32xf32>
    %220 = vector.extract_strided_slice %217 {offsets = [0, 0], sizes = [8, 32], strides = [1, 1]} : vector<8x96xf32> to vector<8x32xf32>
    %221 = vector.extract_strided_slice %217 {offsets = [0, 32], sizes = [8, 32], strides = [1, 1]} : vector<8x96xf32> to vector<8x32xf32>
    %222 = vector.extract_strided_slice %217 {offsets = [0, 64], sizes = [8, 32], strides = [1, 1]} : vector<8x96xf32> to vector<8x32xf32>
    %223 = arith.mulf %221, %196 : vector<8x32xf32>
    %224 = arith.mulf %220, %219 : vector<8x32xf32>
    %225 = arith.addf %223, %224 : vector<8x32xf32>
    %226 = math.tanh %225 : vector<8x32xf32>
    %227 = arith.mulf %222, %226 : vector<8x32xf32>
    %228 = tpu.concatenate %227, %0 in 1 : vector<8x32xf32>, vector<8x96xf32> -> vector<8x128xf32>
    %c0_i32_70 = arith.constant 0 : i32
    %229 = arith.addi %c0_i32_70, %c7_i32 : i32
    %230 = arith.index_cast %229 : i32 to index
    %c0_71 = arith.constant 0 : index
    %c0_72 = arith.constant 0 : index
    %231 = vector.load %arg8[%230, %c0_71, %c0_72] : memref<8x8x128xf32, #tpu.memory_space<vmem>>, vector<1x8x128xf32>
    %232 = vector.shape_cast %231 : vector<1x8x128xf32> to vector<8x128xf32>
    %233 = vector.shape_cast %228 : vector<8x128xf32> to vector<1x8x128xf32>
    tpu.vector_store %arg8[%230, %c0_71, %c0_72], %233 {strides = array<i32>} : memref<8x8x128xf32, #tpu.memory_space<vmem>>, vector<1x8x128xf32>,
    %234 = arith.truncf %228 : vector<8x128xf32> to vector<8x128xbf16>
    %c8_i32 = arith.constant 8 : i32
    %c0_73 = arith.constant 0 : index
    %c0_74 = arith.constant 0 : index
    %c0_75 = arith.constant 0 : index
    %235 = vector.load %arg8[%c0_73, %c0_74, %c0_75] : memref<8x8x128xf32, #tpu.memory_space<vmem>>, vector<8x8x128xf32>
    %236 = vector.shape_cast %235 : vector<8x8x128xf32> to vector<64x128xf32>
    %237 = arith.truncf %236 : vector<64x128xf32> to vector<64x128xbf16>
    %c0_76 = arith.constant 0 : index
    %c0_77 = arith.constant 0 : index
    %238 = vector.load %arg2[%c0_76, %c0_77] : memref<128x128xbf16, #tpu.memory_space<vmem>>, vector<128x128xbf16>
    %cst_78 = arith.constant dense<0.000000e+00> : vector<64x128xf32>
    %239 = tpu.matmul %237, %238, %cst_78 {dimension_numbers = #tpu.dot_dimension_numbers<[1], [0], [0], [1], [0, 0, 1, 1], [], []>} : vector<64x128xbf16>, vector<128x128xbf16>, vector<64x128xf32> -> vector<64x128xf32>
    %c0_79 = arith.constant 0 : index
    %c0_80 = arith.constant 0 : index
    %240 = vector.load %arg4[%c0_79, %c0_80] : memref<1x128xf32, #tpu.memory_space<vmem>>, vector<1x128xf32>
    %241 = vector.broadcast %240 : vector<1x128xf32> to vector<64x128xf32>
    %242 = arith.addf %239, %241 : vector<64x128xf32>
    %243 = vector.shape_cast %242 : vector<64x128xf32> to vector<8x8x128xf32>
    %c0_81 = arith.constant 0 : index
    %c0_82 = arith.constant 0 : index
    %c0_83 = arith.constant 0 : index
    %244 = vector.load %arg9[%c0_81, %c0_82, %c0_83] : memref<8x8x128xf32, #tpu.memory_space<vmem>>, vector<8x8x128xf32>
    tpu.vector_store %arg9[%c0_81, %c0_82, %c0_83], %243 {strides = array<i32>} : memref<8x8x128xf32, #tpu.memory_space<vmem>>, vector<8x8x128xf32>,
    %c0_i32_84 = arith.constant 0 : i32
    %245 = arith.index_cast %c0_i32_84 : i32 to index
    %c0_85 = arith.constant 0 : index
    %c0_86 = arith.constant 0 : index
    %246 = vector.load %arg9[%245, %c0_85, %c0_86] : memref<8x8x128xf32, #tpu.memory_space<vmem>>, vector<1x8x128xf32>
    %247 = vector.shape_cast %246 : vector<1x8x128xf32> to vector<8x128xf32>
    %c0_87 = arith.constant 0 : index
    %c0_88 = arith.constant 0 : index
    %248 = vector.load %arg3[%c0_87, %c0_88] : memref<128x128xbf16, #tpu.memory_space<vmem>>, vector<128x128xbf16>
    %cst_89 = arith.constant dense<0.000000e+00> : vector<8x128xf32>
    %249 = tpu.matmul %1, %248, %cst_89 {dimension_numbers = #tpu.dot_dimension_numbers<[1], [0], [0], [1], [0, 0, 1, 1], [], []>} : vector<8x128xbf16>, vector<128x128xbf16>, vector<8x128xf32> -> vector<8x128xf32>
    %250 = arith.addf %247, %249 : vector<8x128xf32>
    %251 = vector.extract_strided_slice %250 {offsets = [0, 0], sizes = [8, 96], strides = [1, 1]} : vector<8x128xf32> to vector<8x96xf32>
    %252 = arith.negf %251 : vector<8x96xf32>
    %253 = math.exp %252 : vector<8x96xf32>
    %cst_90 = arith.constant 1.000000e+00 : f32
    %254 = vector.broadcast %cst_90 : f32 to vector<8x96xf32>
    %255 = arith.addf %254, %253 : vector<8x96xf32>
    %256 = arith.divf %254, %255 : vector<8x96xf32>
    %257 = vector.extract_strided_slice %250 {offsets = [0, 96], sizes = [8, 32], strides = [1, 1]} : vector<8x128xf32> to vector<8x32xf32>
    %258 = math.tanh %257 : vector<8x32xf32>
    %259 = vector.extract_strided_slice %256 {offsets = [0, 0], sizes = [8, 32], strides = [1, 1]} : vector<8x96xf32> to vector<8x32xf32>
    %260 = vector.extract_strided_slice %256 {offsets = [0, 32], sizes = [8, 32], strides = [1, 1]} : vector<8x96xf32> to vector<8x32xf32>
    %261 = vector.extract_strided_slice %256 {offsets = [0, 64], sizes = [8, 32], strides = [1, 1]} : vector<8x96xf32> to vector<8x32xf32>
    %262 = arith.mulf %260, %2 : vector<8x32xf32>
    %263 = arith.mulf %259, %258 : vector<8x32xf32>
    %264 = arith.addf %262, %263 : vector<8x32xf32>
    %265 = math.tanh %264 : vector<8x32xf32>
    %266 = arith.mulf %261, %265 : vector<8x32xf32>
    %267 = tpu.concatenate %266, %0 in 1 : vector<8x32xf32>, vector<8x96xf32> -> vector<8x128xf32>
    %268 = arith.truncf %267 : vector<8x128xf32> to vector<8x128xbf16>
    %c1_i32_91 = arith.constant 1 : i32
    %269 = arith.index_cast %c1_i32_91 : i32 to index
    %c0_92 = arith.constant 0 : index
    %c0_93 = arith.constant 0 : index
    %270 = vector.load %arg9[%269, %c0_92, %c0_93] : memref<8x8x128xf32, #tpu.memory_space<vmem>>, vector<1x8x128xf32>
    %271 = vector.shape_cast %270 : vector<1x8x128xf32> to vector<8x128xf32>
    %c0_94 = arith.constant 0 : index
    %c0_95 = arith.constant 0 : index
    %272 = vector.load %arg3[%c0_94, %c0_95] : memref<128x128xbf16, #tpu.memory_space<vmem>>, vector<128x128xbf16>
    %cst_96 = arith.constant dense<0.000000e+00> : vector<8x128xf32>
    %273 = tpu.matmul %268, %272, %cst_96 {dimension_numbers = #tpu.dot_dimension_numbers<[1], [0], [0], [1], [0, 0, 1, 1], [], []>} : vector<8x128xbf16>, vector<128x128xbf16>, vector<8x128xf32> -> vector<8x128xf32>
    %274 = arith.addf %271, %273 : vector<8x128xf32>
    %275 = vector.extract_strided_slice %274 {offsets = [0, 0], sizes = [8, 96], strides = [1, 1]} : vector<8x128xf32> to vector<8x96xf32>
    %276 = arith.negf %275 : vector<8x96xf32>
    %277 = math.exp %276 : vector<8x96xf32>
    %cst_97 = arith.constant 1.000000e+00 : f32
    %278 = vector.broadcast %cst_97 : f32 to vector<8x96xf32>
    %279 = arith.addf %278, %277 : vector<8x96xf32>
    %280 = arith.divf %278, %279 : vector<8x96xf32>
    %281 = vector.extract_strided_slice %274 {offsets = [0, 96], sizes = [8, 32], strides = [1, 1]} : vector<8x128xf32> to vector<8x32xf32>
    %282 = math.tanh %281 : vector<8x32xf32>
    %283 = vector.extract_strided_slice %280 {offsets = [0, 0], sizes = [8, 32], strides = [1, 1]} : vector<8x96xf32> to vector<8x32xf32>
    %284 = vector.extract_strided_slice %280 {offsets = [0, 32], sizes = [8, 32], strides = [1, 1]} : vector<8x96xf32> to vector<8x32xf32>
    %285 = vector.extract_strided_slice %280 {offsets = [0, 64], sizes = [8, 32], strides = [1, 1]} : vector<8x96xf32> to vector<8x32xf32>
    %286 = arith.mulf %284, %264 : vector<8x32xf32>
    %287 = arith.mulf %283, %282 : vector<8x32xf32>
    %288 = arith.addf %286, %287 : vector<8x32xf32>
    %289 = math.tanh %288 : vector<8x32xf32>
    %290 = arith.mulf %285, %289 : vector<8x32xf32>
    %291 = tpu.concatenate %290, %0 in 1 : vector<8x32xf32>, vector<8x96xf32> -> vector<8x128xf32>
    %292 = arith.truncf %291 : vector<8x128xf32> to vector<8x128xbf16>
    %c2_i32_98 = arith.constant 2 : i32
    %293 = arith.index_cast %c2_i32_98 : i32 to index
    %c0_99 = arith.constant 0 : index
    %c0_100 = arith.constant 0 : index
    %294 = vector.load %arg9[%293, %c0_99, %c0_100] : memref<8x8x128xf32, #tpu.memory_space<vmem>>, vector<1x8x128xf32>
    %295 = vector.shape_cast %294 : vector<1x8x128xf32> to vector<8x128xf32>
    %c0_101 = arith.constant 0 : index
    %c0_102 = arith.constant 0 : index
    %296 = vector.load %arg3[%c0_101, %c0_102] : memref<128x128xbf16, #tpu.memory_space<vmem>>, vector<128x128xbf16>
    %cst_103 = arith.constant dense<0.000000e+00> : vector<8x128xf32>
    %297 = tpu.matmul %292, %296, %cst_103 {dimension_numbers = #tpu.dot_dimension_numbers<[1], [0], [0], [1], [0, 0, 1, 1], [], []>} : vector<8x128xbf16>, vector<128x128xbf16>, vector<8x128xf32> -> vector<8x128xf32>
    %298 = arith.addf %295, %297 : vector<8x128xf32>
    %299 = vector.extract_strided_slice %298 {offsets = [0, 0], sizes = [8, 96], strides = [1, 1]} : vector<8x128xf32> to vector<8x96xf32>
    %300 = arith.negf %299 : vector<8x96xf32>
    %301 = math.exp %300 : vector<8x96xf32>
    %cst_104 = arith.constant 1.000000e+00 : f32
    %302 = vector.broadcast %cst_104 : f32 to vector<8x96xf32>
    %303 = arith.addf %302, %301 : vector<8x96xf32>
    %304 = arith.divf %302, %303 : vector<8x96xf32>
    %305 = vector.extract_strided_slice %298 {offsets = [0, 96], sizes = [8, 32], strides = [1, 1]} : vector<8x128xf32> to vector<8x32xf32>
    %306 = math.tanh %305 : vector<8x32xf32>
    %307 = vector.extract_strided_slice %304 {offsets = [0, 0], sizes = [8, 32], strides = [1, 1]} : vector<8x96xf32> to vector<8x32xf32>
    %308 = vector.extract_strided_slice %304 {offsets = [0, 32], sizes = [8, 32], strides = [1, 1]} : vector<8x96xf32> to vector<8x32xf32>
    %309 = vector.extract_strided_slice %304 {offsets = [0, 64], sizes = [8, 32], strides = [1, 1]} : vector<8x96xf32> to vector<8x32xf32>
    %310 = arith.mulf %308, %288 : vector<8x32xf32>
    %311 = arith.mulf %307, %306 : vector<8x32xf32>
    %312 = arith.addf %310, %311 : vector<8x32xf32>
    %313 = math.tanh %312 : vector<8x32xf32>
    %314 = arith.mulf %309, %313 : vector<8x32xf32>
    %315 = tpu.concatenate %314, %0 in 1 : vector<8x32xf32>, vector<8x96xf32> -> vector<8x128xf32>
    %316 = arith.truncf %315 : vector<8x128xf32> to vector<8x128xbf16>
    %c3_i32_105 = arith.constant 3 : i32
    %317 = arith.index_cast %c3_i32_105 : i32 to index
    %c0_106 = arith.constant 0 : index
    %c0_107 = arith.constant 0 : index
    %318 = vector.load %arg9[%317, %c0_106, %c0_107] : memref<8x8x128xf32, #tpu.memory_space<vmem>>, vector<1x8x128xf32>
    %319 = vector.shape_cast %318 : vector<1x8x128xf32> to vector<8x128xf32>
    %c0_108 = arith.constant 0 : index
    %c0_109 = arith.constant 0 : index
    %320 = vector.load %arg3[%c0_108, %c0_109] : memref<128x128xbf16, #tpu.memory_space<vmem>>, vector<128x128xbf16>
    %cst_110 = arith.constant dense<0.000000e+00> : vector<8x128xf32>
    %321 = tpu.matmul %316, %320, %cst_110 {dimension_numbers = #tpu.dot_dimension_numbers<[1], [0], [0], [1], [0, 0, 1, 1], [], []>} : vector<8x128xbf16>, vector<128x128xbf16>, vector<8x128xf32> -> vector<8x128xf32>
    %322 = arith.addf %319, %321 : vector<8x128xf32>
    %323 = vector.extract_strided_slice %322 {offsets = [0, 0], sizes = [8, 96], strides = [1, 1]} : vector<8x128xf32> to vector<8x96xf32>
    %324 = arith.negf %323 : vector<8x96xf32>
    %325 = math.exp %324 : vector<8x96xf32>
    %cst_111 = arith.constant 1.000000e+00 : f32
    %326 = vector.broadcast %cst_111 : f32 to vector<8x96xf32>
    %327 = arith.addf %326, %325 : vector<8x96xf32>
    %328 = arith.divf %326, %327 : vector<8x96xf32>
    %329 = vector.extract_strided_slice %322 {offsets = [0, 96], sizes = [8, 32], strides = [1, 1]} : vector<8x128xf32> to vector<8x32xf32>
    %330 = math.tanh %329 : vector<8x32xf32>
    %331 = vector.extract_strided_slice %328 {offsets = [0, 0], sizes = [8, 32], strides = [1, 1]} : vector<8x96xf32> to vector<8x32xf32>
    %332 = vector.extract_strided_slice %328 {offsets = [0, 32], sizes = [8, 32], strides = [1, 1]} : vector<8x96xf32> to vector<8x32xf32>
    %333 = vector.extract_strided_slice %328 {offsets = [0, 64], sizes = [8, 32], strides = [1, 1]} : vector<8x96xf32> to vector<8x32xf32>
    %334 = arith.mulf %332, %312 : vector<8x32xf32>
    %335 = arith.mulf %331, %330 : vector<8x32xf32>
    %336 = arith.addf %334, %335 : vector<8x32xf32>
    %337 = math.tanh %336 : vector<8x32xf32>
    %338 = arith.mulf %333, %337 : vector<8x32xf32>
    %339 = tpu.concatenate %338, %0 in 1 : vector<8x32xf32>, vector<8x96xf32> -> vector<8x128xf32>
    %340 = arith.truncf %339 : vector<8x128xf32> to vector<8x128xbf16>
    %c4_i32_112 = arith.constant 4 : i32
    %341 = arith.index_cast %c4_i32_112 : i32 to index
    %c0_113 = arith.constant 0 : index
    %c0_114 = arith.constant 0 : index
    %342 = vector.load %arg9[%341, %c0_113, %c0_114] : memref<8x8x128xf32, #tpu.memory_space<vmem>>, vector<1x8x128xf32>
    %343 = vector.shape_cast %342 : vector<1x8x128xf32> to vector<8x128xf32>
    %c0_115 = arith.constant 0 : index
    %c0_116 = arith.constant 0 : index
    %344 = vector.load %arg3[%c0_115, %c0_116] : memref<128x128xbf16, #tpu.memory_space<vmem>>, vector<128x128xbf16>
    %cst_117 = arith.constant dense<0.000000e+00> : vector<8x128xf32>
    %345 = tpu.matmul %340, %344, %cst_117 {dimension_numbers = #tpu.dot_dimension_numbers<[1], [0], [0], [1], [0, 0, 1, 1], [], []>} : vector<8x128xbf16>, vector<128x128xbf16>, vector<8x128xf32> -> vector<8x128xf32>
    %346 = arith.addf %343, %345 : vector<8x128xf32>
    %347 = vector.extract_strided_slice %346 {offsets = [0, 0], sizes = [8, 96], strides = [1, 1]} : vector<8x128xf32> to vector<8x96xf32>
    %348 = arith.negf %347 : vector<8x96xf32>
    %349 = math.exp %348 : vector<8x96xf32>
    %cst_118 = arith.constant 1.000000e+00 : f32
    %350 = vector.broadcast %cst_118 : f32 to vector<8x96xf32>
    %351 = arith.addf %350, %349 : vector<8x96xf32>
    %352 = arith.divf %350, %351 : vector<8x96xf32>
    %353 = vector.extract_strided_slice %346 {offsets = [0, 96], sizes = [8, 32], strides = [1, 1]} : vector<8x128xf32> to vector<8x32xf32>
    %354 = math.tanh %353 : vector<8x32xf32>
    %355 = vector.extract_strided_slice %352 {offsets = [0, 0], sizes = [8, 32], strides = [1, 1]} : vector<8x96xf32> to vector<8x32xf32>
    %356 = vector.extract_strided_slice %352 {offsets = [0, 32], sizes = [8, 32], strides = [1, 1]} : vector<8x96xf32> to vector<8x32xf32>
    %357 = vector.extract_strided_slice %352 {offsets = [0, 64], sizes = [8, 32], strides = [1, 1]} : vector<8x96xf32> to vector<8x32xf32>
    %358 = arith.mulf %356, %336 : vector<8x32xf32>
    %359 = arith.mulf %355, %354 : vector<8x32xf32>
    %360 = arith.addf %358, %359 : vector<8x32xf32>
    %361 = math.tanh %360 : vector<8x32xf32>
    %362 = arith.mulf %357, %361 : vector<8x32xf32>
    %363 = tpu.concatenate %362, %0 in 1 : vector<8x32xf32>, vector<8x96xf32> -> vector<8x128xf32>
    %364 = arith.truncf %363 : vector<8x128xf32> to vector<8x128xbf16>
    %c5_i32_119 = arith.constant 5 : i32
    %365 = arith.index_cast %c5_i32_119 : i32 to index
    %c0_120 = arith.constant 0 : index
    %c0_121 = arith.constant 0 : index
    %366 = vector.load %arg9[%365, %c0_120, %c0_121] : memref<8x8x128xf32, #tpu.memory_space<vmem>>, vector<1x8x128xf32>
    %367 = vector.shape_cast %366 : vector<1x8x128xf32> to vector<8x128xf32>
    %c0_122 = arith.constant 0 : index
    %c0_123 = arith.constant 0 : index
    %368 = vector.load %arg3[%c0_122, %c0_123] : memref<128x128xbf16, #tpu.memory_space<vmem>>, vector<128x128xbf16>
    %cst_124 = arith.constant dense<0.000000e+00> : vector<8x128xf32>
    %369 = tpu.matmul %364, %368, %cst_124 {dimension_numbers = #tpu.dot_dimension_numbers<[1], [0], [0], [1], [0, 0, 1, 1], [], []>} : vector<8x128xbf16>, vector<128x128xbf16>, vector<8x128xf32> -> vector<8x128xf32>
    %370 = arith.addf %367, %369 : vector<8x128xf32>
    %371 = vector.extract_strided_slice %370 {offsets = [0, 0], sizes = [8, 96], strides = [1, 1]} : vector<8x128xf32> to vector<8x96xf32>
    %372 = arith.negf %371 : vector<8x96xf32>
    %373 = math.exp %372 : vector<8x96xf32>
    %cst_125 = arith.constant 1.000000e+00 : f32
    %374 = vector.broadcast %cst_125 : f32 to vector<8x96xf32>
    %375 = arith.addf %374, %373 : vector<8x96xf32>
    %376 = arith.divf %374, %375 : vector<8x96xf32>
    %377 = vector.extract_strided_slice %370 {offsets = [0, 96], sizes = [8, 32], strides = [1, 1]} : vector<8x128xf32> to vector<8x32xf32>
    %378 = math.tanh %377 : vector<8x32xf32>
    %379 = vector.extract_strided_slice %376 {offsets = [0, 0], sizes = [8, 32], strides = [1, 1]} : vector<8x96xf32> to vector<8x32xf32>
    %380 = vector.extract_strided_slice %376 {offsets = [0, 32], sizes = [8, 32], strides = [1, 1]} : vector<8x96xf32> to vector<8x32xf32>
    %381 = vector.extract_strided_slice %376 {offsets = [0, 64], sizes = [8, 32], strides = [1, 1]} : vector<8x96xf32> to vector<8x32xf32>
    %382 = arith.mulf %380, %360 : vector<8x32xf32>
    %383 = arith.mulf %379, %378 : vector<8x32xf32>
    %384 = arith.addf %382, %383 : vector<8x32xf32>
    %385 = math.tanh %384 : vector<8x32xf32>
    %386 = arith.mulf %381, %385 : vector<8x32xf32>
    %387 = tpu.concatenate %386, %0 in 1 : vector<8x32xf32>, vector<8x96xf32> -> vector<8x128xf32>
    %388 = arith.truncf %387 : vector<8x128xf32> to vector<8x128xbf16>
    %c6_i32_126 = arith.constant 6 : i32
    %389 = arith.index_cast %c6_i32_126 : i32 to index
    %c0_127 = arith.constant 0 : index
    %c0_128 = arith.constant 0 : index
    %390 = vector.load %arg9[%389, %c0_127, %c0_128] : memref<8x8x128xf32, #tpu.memory_space<vmem>>, vector<1x8x128xf32>
    %391 = vector.shape_cast %390 : vector<1x8x128xf32> to vector<8x128xf32>
    %c0_129 = arith.constant 0 : index
    %c0_130 = arith.constant 0 : index
    %392 = vector.load %arg3[%c0_129, %c0_130] : memref<128x128xbf16, #tpu.memory_space<vmem>>, vector<128x128xbf16>
    %cst_131 = arith.constant dense<0.000000e+00> : vector<8x128xf32>
    %393 = tpu.matmul %388, %392, %cst_131 {dimension_numbers = #tpu.dot_dimension_numbers<[1], [0], [0], [1], [0, 0, 1, 1], [], []>} : vector<8x128xbf16>, vector<128x128xbf16>, vector<8x128xf32> -> vector<8x128xf32>
    %394 = arith.addf %391, %393 : vector<8x128xf32>
    %395 = vector.extract_strided_slice %394 {offsets = [0, 0], sizes = [8, 96], strides = [1, 1]} : vector<8x128xf32> to vector<8x96xf32>
    %396 = arith.negf %395 : vector<8x96xf32>
    %397 = math.exp %396 : vector<8x96xf32>
    %cst_132 = arith.constant 1.000000e+00 : f32
    %398 = vector.broadcast %cst_132 : f32 to vector<8x96xf32>
    %399 = arith.addf %398, %397 : vector<8x96xf32>
    %400 = arith.divf %398, %399 : vector<8x96xf32>
    %401 = vector.extract_strided_slice %394 {offsets = [0, 96], sizes = [8, 32], strides = [1, 1]} : vector<8x128xf32> to vector<8x32xf32>
    %402 = math.tanh %401 : vector<8x32xf32>
    %403 = vector.extract_strided_slice %400 {offsets = [0, 0], sizes = [8, 32], strides = [1, 1]} : vector<8x96xf32> to vector<8x32xf32>
    %404 = vector.extract_strided_slice %400 {offsets = [0, 32], sizes = [8, 32], strides = [1, 1]} : vector<8x96xf32> to vector<8x32xf32>
    %405 = vector.extract_strided_slice %400 {offsets = [0, 64], sizes = [8, 32], strides = [1, 1]} : vector<8x96xf32> to vector<8x32xf32>
    %406 = arith.mulf %404, %384 : vector<8x32xf32>
    %407 = arith.mulf %403, %402 : vector<8x32xf32>
    %408 = arith.addf %406, %407 : vector<8x32xf32>
    %409 = math.tanh %408 : vector<8x32xf32>
    %410 = arith.mulf %405, %409 : vector<8x32xf32>
    %411 = tpu.concatenate %410, %0 in 1 : vector<8x32xf32>, vector<8x96xf32> -> vector<8x128xf32>
    %412 = arith.truncf %411 : vector<8x128xf32> to vector<8x128xbf16>
    %c7_i32_133 = arith.constant 7 : i32
    %413 = arith.index_cast %c7_i32_133 : i32 to index
    %c0_134 = arith.constant 0 : index
    %c0_135 = arith.constant 0 : index
    %414 = vector.load %arg9[%413, %c0_134, %c0_135] : memref<8x8x128xf32, #tpu.memory_space<vmem>>, vector<1x8x128xf32>
    %415 = vector.shape_cast %414 : vector<1x8x128xf32> to vector<8x128xf32>
    %c0_136 = arith.constant 0 : index
    %c0_137 = arith.constant 0 : index
    %416 = vector.load %arg3[%c0_136, %c0_137] : memref<128x128xbf16, #tpu.memory_space<vmem>>, vector<128x128xbf16>
    %cst_138 = arith.constant dense<0.000000e+00> : vector<8x128xf32>
    %417 = tpu.matmul %412, %416, %cst_138 {dimension_numbers = #tpu.dot_dimension_numbers<[1], [0], [0], [1], [0, 0, 1, 1], [], []>} : vector<8x128xbf16>, vector<128x128xbf16>, vector<8x128xf32> -> vector<8x128xf32>
    %418 = arith.addf %415, %417 : vector<8x128xf32>
    %419 = vector.extract_strided_slice %418 {offsets = [0, 0], sizes = [8, 96], strides = [1, 1]} : vector<8x128xf32> to vector<8x96xf32>
    %420 = arith.negf %419 : vector<8x96xf32>
    %421 = math.exp %420 : vector<8x96xf32>
    %cst_139 = arith.constant 1.000000e+00 : f32
    %422 = vector.broadcast %cst_139 : f32 to vector<8x96xf32>
    %423 = arith.addf %422, %421 : vector<8x96xf32>
    %424 = arith.divf %422, %423 : vector<8x96xf32>
    %425 = vector.extract_strided_slice %418 {offsets = [0, 96], sizes = [8, 32], strides = [1, 1]} : vector<8x128xf32> to vector<8x32xf32>
    %426 = math.tanh %425 : vector<8x32xf32>
    %427 = vector.extract_strided_slice %424 {offsets = [0, 0], sizes = [8, 32], strides = [1, 1]} : vector<8x96xf32> to vector<8x32xf32>
    %428 = vector.extract_strided_slice %424 {offsets = [0, 32], sizes = [8, 32], strides = [1, 1]} : vector<8x96xf32> to vector<8x32xf32>
    %429 = vector.extract_strided_slice %424 {offsets = [0, 64], sizes = [8, 32], strides = [1, 1]} : vector<8x96xf32> to vector<8x32xf32>
    %430 = arith.mulf %428, %408 : vector<8x32xf32>
    %431 = arith.mulf %427, %426 : vector<8x32xf32>
    %432 = arith.addf %430, %431 : vector<8x32xf32>
    %433 = math.tanh %432 : vector<8x32xf32>
    %434 = arith.mulf %429, %433 : vector<8x32xf32>
    %435 = tpu.concatenate %434, %0 in 1 : vector<8x32xf32>, vector<8x96xf32> -> vector<8x128xf32>
    %436 = arith.truncf %435 : vector<8x128xf32> to vector<8x128xbf16>
    %c8_i32_140 = arith.constant 8 : i32
    %c0_141 = arith.constant 0 : index
    %c0_142 = arith.constant 0 : index
    %437 = vector.load %arg5[%c0_141, %c0_142] : memref<128x128xbf16, #tpu.memory_space<vmem>>, vector<128x128xbf16>
    %cst_143 = arith.constant dense<0.000000e+00> : vector<8x128xf32>
    %438 = tpu.matmul %436, %437, %cst_143 {dimension_numbers = #tpu.dot_dimension_numbers<[1], [0], [0], [1], [0, 0, 1, 1], [], []>} : vector<8x128xbf16>, vector<128x128xbf16>, vector<8x128xf32> -> vector<8x128xf32>
    %c0_144 = arith.constant 0 : index
    %c0_145 = arith.constant 0 : index
    %439 = vector.load %arg6[%c0_144, %c0_145] : memref<1x128xf32, #tpu.memory_space<vmem>>, vector<1x128xf32>
    %440 = vector.broadcast %439 : vector<1x128xf32> to vector<8x128xf32>
    %441 = arith.addf %438, %440 : vector<8x128xf32>
    %c0_146 = arith.constant 0 : index
    %c0_147 = arith.constant 0 : index
    %442 = vector.load %arg7[%c0_146, %c0_147] : memref<8x128xf32, #tpu.memory_space<vmem>>, vector<8x128xf32>
    tpu.vector_store %arg7[%c0_146, %c0_147], %441 {strides = array<i32>} : memref<8x128xf32, #tpu.memory_space<vmem>>, vector<8x128xf32>,
    return
  }
}

</mosaic_0001>

<llo_original>
// kernel: stock_lstm_forward.1
$region0: #{stock_lstm_forward.1}
  #allocation0 [shape = 'u32[]', space=smem, size = 0x4, offset = 0x4, fixed_abs, tag = 'smem constant byte address 0x4 - core index']
  #allocation1 [shape = 'u32[144,128]{1,0:T(1,128)}', space=vmem, size = 0x12000, scoped, tag = 'internal scratch']
  #allocation2 [shape = 'f32[8,8,128]{2,1,0:T(8,128)}', space=vmem, size = 0x8000, scoped, tag = 'scratch operand']
  #allocation3 [shape = 'f32[8,8,128]{2,1,0:T(8,128)}', space=vmem, size = 0x8000, scoped, tag = 'scratch operand']
  %s0 = inlined_call_operand.vmem [shape: f32[8,8,128], index: 0, kind: input, shape index: {}]
  %s1 = inlined_call_operand.vmem [shape: bf16[128,128], index: 1, kind: input, shape index: {}]
  %s2 = inlined_call_operand.vmem [shape: bf16[128,128], index: 2, kind: input, shape index: {}]
  %s3 = inlined_call_operand.vmem [shape: bf16[128,128], index: 3, kind: input, shape index: {}]
  %s4 = inlined_call_operand.vmem [shape: f32[1,128], index: 4, kind: input, shape index: {}]
  %s5 = inlined_call_operand.vmem [shape: bf16[128,128], index: 5, kind: input, shape index: {}]
  %s6 = inlined_call_operand.vmem [shape: f32[1,128], index: 6, kind: input, shape index: {}]
  %s7 = inlined_call_operand.vmem [shape: f32[8,128], index: 7, kind: output, shape index: {}]
  %s8 = sld [smem:[#allocation0]]
  $region38: #{stock_lstm_forward.1} parent=0
    _
  %s10 = ssub.s32 1, %s8
  %s11 = scalar_select 0, %s10, %s8
  // Predicated region
  $region2: #{stock_lstm_forward.1} parent=0 // pred_check
    _
  $region3: #{stock_lstm_forward.1} parent=0 // pred_check_branch
    %13 = sbr.rel (0) target = $region5
  $region4: #{stock_lstm_forward.1} parent=0 // pred_region
    _
  $region5: #{stock_lstm_forward.1} parent=0 // pred_fallthru
    _
  // Predicated region
  $region6: #{stock_lstm_forward.1} parent=0 // pred_check
    _
  $region7: #{stock_lstm_forward.1} parent=0 // pred_check_branch
    %15 = sbr.rel (0) target = $region9
  $region8: #{stock_lstm_forward.1} parent=0 // pred_region
    _
  $region9: #{stock_lstm_forward.1} parent=0 // pred_fallthru
    _
  // Predicated region
  $region10: #{stock_lstm_forward.1} parent=0 // pred_check
    _
  $region11: #{stock_lstm_forward.1} parent=0 // pred_check_branch
    %17 = sbr.rel (0) target = $region13
  $region12: #{stock_lstm_forward.1} parent=0 // pred_region
    _
  $region13: #{stock_lstm_forward.1} parent=0 // pred_fallthru
    _
  // Predicated region
  $region14: #{stock_lstm_forward.1} parent=0 // pred_check
    _
  $region15: #{stock_lstm_forward.1} parent=0 // pred_check_branch
    %19 = sbr.rel (0) target = $region17
  $region16: #{stock_lstm_forward.1} parent=0 // pred_region
    _
  $region17: #{stock_lstm_forward.1} parent=0 // pred_fallthru
    _
  // Predicated region
  $region18: #{stock_lstm_forward.1} parent=0 // pred_check
    _
  $region19: #{stock_lstm_forward.1} parent=0 // pred_check_branch
    %21 = sbr.rel (0) target = $region21
  $region20: #{stock_lstm_forward.1} parent=0 // pred_region
    _
  $region21: #{stock_lstm_forward.1} parent=0 // pred_fallthru
    _
  // Predicated region
  $region22: #{stock_lstm_forward.1} parent=0 // pred_check
    _
  $region23: #{stock_lstm_forward.1} parent=0 // pred_check_branch
    %23 = sbr.rel (0) target = $region25
  $region24: #{stock_lstm_forward.1} parent=0 // pred_region
    _
  $region25: #{stock_lstm_forward.1} parent=0 // pred_fallthru
    _
  // Predicated region
  $region26: #{stock_lstm_forward.1} parent=0 // pred_check
    _
  $region27: #{stock_lstm_forward.1} parent=0 // pred_check_branch
    %25 = sbr.rel (0) target = $region29
  $region28: #{stock_lstm_forward.1} parent=0 // pred_region
    _
  $region29: #{stock_lstm_forward.1} parent=0 // pred_fallthru
    _
  %v27 = vld [vmem:[%s0] sm:$0xff]
  %v28 = vld [vmem:[%s1] sm:$0xf]
  %v29 = vld [vmem:[%s1 + $0x4] sm:$0xf]
  %v30 = vld [vmem:[%s1 + $0x8] sm:$0xf]
  %v31 = vld [vmem:[%s1 + $0xc] sm:$0xf]
  %v32 = vld [vmem:[%s1 + $0x10] sm:$0xf]
  %v33 = vld [vmem:[%s1 + $0x14] sm:$0xf]
  %v34 = vld [vmem:[%s1 + $0x18] sm:$0xf]
  %v35 = vld [vmem:[%s1 + $0x1c] sm:$0xf]
  %v36 = vld [vmem:[%s1 + $0x20] sm:$0xf]
  %v37 = vld [vmem:[%s1 + $0x24] sm:$0xf]
  %v38 = vld [vmem:[%s1 + $0x28] sm:$0xf]
  %v39 = vld [vmem:[%s1 + $0x2c] sm:$0xf]
  %v40 = vld [vmem:[%s1 + $0x30] sm:$0xf]
  %v41 = vld [vmem:[%s1 + $0x34] sm:$0xf]
  %v42 = vld [vmem:[%s1 + $0x38] sm:$0xf]
  %v43 = vld [vmem:[%s1 + $0x3c] sm:$0xf]
  %v60 = vunpack.c.l.b16 %v28
  %v61 = vunpack.c.l.b16 %v29
  %v62 = vunpack.c.l.b16 %v30
  %v63 = vunpack.c.l.b16 %v31
  %v64 = vunpack.c.l.b16 %v32
  %v65 = vunpack.c.l.b16 %v33
  %v66 = vunpack.c.l.b16 %v34
  %v67 = vunpack.c.l.b16 %v35
  %v68 = vunpack.c.l.b16 %v36
  %v69 = vunpack.c.l.b16 %v37
  %v70 = vunpack.c.l.b16 %v38
  %v71 = vunpack.c.l.b16 %v39
  %v72 = vunpack.c.l.b16 %v40
  %v73 = vunpack.c.l.b16 %v41
  %v74 = vunpack.c.l.b16 %v42
  %v75 = vunpack.c.l.b16 %v43
  %v76 = vpack.c.b16 %v61, %v60
  %v77 = vpack.c.b16 %v63, %v62
  %v78 = vpack.c.b16 %v65, %v64
  %v79 = vpack.c.b16 %v67, %v66
  %v80 = vpack.c.b16 %v69, %v68
  %v81 = vpack.c.b16 %v71, %v70
  %v82 = vpack.c.b16 %v73, %v72
  %v83 = vpack.c.b16 %v75, %v74
  %92 = vmatprep.subr.bf16.mxu0 0
  %93 = vmatpush1.bf16.msra.mxu0 %v76
  %94 = vmatprep.subr.bf16.mxu0 0
  %95 = vmatpush1.bf16.msra.mxu0 %v77
  %96 = vmatprep.subr.bf16.mxu0 0
  %97 = vmatpush1.bf16.msra.mxu0 %v78
  %98 = vmatprep.subr.bf16.mxu0 0
  %99 = vmatpush1.bf16.msra.mxu0 %v79
  %100 = vmatprep.subr.bf16.mxu0 0
  %101 = vmatpush1.bf16.msra.mxu0 %v80
  %102 = vmatprep.subr.bf16.mxu0 0
  %103 = vmatpush1.bf16.msra.mxu0 %v81
  %104 = vmatprep.subr.bf16.mxu0 0
  %105 = vmatpush1.bf16.msra.mxu0 %v82
  %106 = vmatprep.subr.bf16.mxu0 0
  %107 = vmatpush1.bf16.msra.mxu0 %v83
  %108 = vmatprep.subr.bf16.mxu0 0
  %109 = vmatpush1.bf16.msra.mxu0 0
  %110 = vmatprep.subr.bf16.mxu0 0
  %111 = vmatpush1.bf16.msra.mxu0 0
  %112 = vmatprep.subr.bf16.mxu0 0
  %113 = vmatpush1.bf16.msra.mxu0 0
  %114 = vmatprep.subr.bf16.mxu0 0
  %115 = vmatpush1.bf16.msra.mxu0 0
  %116 = vmatprep.subr.bf16.mxu0 0
  %117 = vmatpush1.bf16.msra.mxu0 0
  %118 = vmatprep.subr.bf16.mxu0 0
  %119 = vmatpush1.bf16.msra.mxu0 0
  %120 = vmatprep.subr.bf16.mxu0 0
  %121 = vmatpush1.bf16.msra.mxu0 0
  %122 = vmatprep.subr.bf16.mxu0 0
  %123 = vmatpush1.bf16.msra.mxu0 0
  %124 = vmatprep.mubr.bf16.mxu0 0
  %125 = vmatmul.mubr.bf16.gmra.mrb[0].mxu0 0
  %v126 = vpop.f32.mrb[0].mxu0
  %v127 = vadd.f32 0.0, %v126
  %v128 = vpop.f32.mrb[0].mxu0
  %v129 = vpop.f32.mrb[0].mxu0
  %v130 = vpop.f32.mrb[0].mxu0
  %131 = vdwg.mxu0
  %v132 = vadd.f32 %v27, %v127
  %v133 = vxor.u32 %v132, 2147483648
  %v134 = vmul.f32 %v133, 1.442695
  %v135 = vpow.pop %v134
  %v136 = vadd.f32 %v135, 1.0
  %v137 = vrcp.pop %v136
  %v138 = vmul.f32 1.0, %v137
  %v139 = vtanh.pop %v132
  %v140 = vmul.f32 %v138, 0.0
  %142 = vrot.lane.b32.xlu0 %v139, 32
  %v143 = vpop.permute.xlu0 %142
  %v145 = vmul.f32 %v138, %v143
  %147 = vrot.lane.b32.xlu0 %v145, 32
  %v148 = vpop.permute.xlu0 %147
  %v150 = vadd.f32 %v140, %v148
  %v151 = vtanh.pop %v150
  %153 = vrot.lane.b32.xlu0 %v151, 32
  %v154 = vpop.permute.xlu0 %153
  %v156 = vmul.f32 %v138, %v154
  %158 = vrot.lane.b32.xlu0 %v156, 64
  %v159 = vpop.permute.xlu0 %158
  %vm161 = vcmask 261120
  %v162 = vsel %vm161, %v159, 0.0
  %163 = vst [vmem:[#allocation2] sm:$0xff] %v162
  %v164 = vpack.c.bf16 %v162, %v162
  %s165 = scalar_lea.vmem %s0, 8
  %v166 = vld [vmem:[%s165] sm:$0xff]
  %v167 = vld [vmem:[%s1] sm:$0xf]
  %v168 = vld [vmem:[%s1 + $0x4] sm:$0xf]
  %v169 = vld [vmem:[%s1 + $0x8] sm:$0xf]
  %v170 = vld [vmem:[%s1 + $0xc] sm:$0xf]
  %v171 = vld [vmem:[%s1 + $0x10] sm:$0xf]
  %v172 = vld [vmem:[%s1 + $0x14] sm:$0xf]
  %v173 = vld [vmem:[%s1 + $0x18] sm:$0xf]
  %v174 = vld [vmem:[%s1 + $0x1c] sm:$0xf]
  %v175 = vld [vmem:[%s1 + $0x20] sm:$0xf]
  %v176 = vld [vmem:[%s1 + $0x24] sm:$0xf]
  %v177 = vld [vmem:[%s1 + $0x28] sm:$0xf]
  %v178 = vld [vmem:[%s1 + $0x2c] sm:$0xf]
  %v179 = vld [vmem:[%s1 + $0x30] sm:$0xf]
  %v180 = vld [vmem:[%s1 + $0x34] sm:$0xf]
  %v181 = vld [vmem:[%s1 + $0x38] sm:$0xf]
  %v182 = vld [vmem:[%s1 + $0x3c] sm:$0xf]
  %v199 = vunpack.c.l.b16 %v167
  %v200 = vunpack.c.l.b16 %v168
  %v201 = vunpack.c.l.b16 %v169
  %v202 = vunpack.c.l.b16 %v170
  %v203 = vunpack.c.l.b16 %v171
  %v204 = vunpack.c.l.b16 %v172
  %v205 = vunpack.c.l.b16 %v173
  %v206 = vunpack.c.l.b16 %v174
  %v207 = vunpack.c.l.b16 %v175
  %v208 = vunpack.c.l.b16 %v176
  %v209 = vunpack.c.l.b16 %v177
  %v210 = vunpack.c.l.b16 %v178
  %v211 = vunpack.c.l.b16 %v179
  %v212 = vunpack.c.l.b16 %v180
  %v213 = vunpack.c.l.b16 %v181
  %v214 = vunpack.c.l.b16 %v182
  %v215 = vpack.c.b16 %v200, %v199
  %v216 = vpack.c.b16 %v202, %v201
  %v217 = vpack.c.b16 %v204, %v203
  %v218 = vpack.c.b16 %v206, %v205
  %v219 = vpack.c.b16 %v208, %v207
  %v220 = vpack.c.b16 %v210, %v209
  %v221 = vpack.c.b16 %v212, %v211
  %v222 = vpack.c.b16 %v214, %v213
  %231 = vmatprep.subr.bf16.mxu0 0
  %232 = vmatpush1.bf16.msra.mxu0 %v215
  %233 = vmatprep.subr.bf16.mxu0 0
  %234 = vmatpush1.bf16.msra.mxu0 %v216
  %235 = vmatprep.subr.bf16.mxu0 0
  %236 = vmatpush1.bf16.msra.mxu0 %v217
  %237 = vmatprep.subr.bf16.mxu0 0
  %238 = vmatpush1.bf16.msra.mxu0 %v218
  %239 = vmatprep.subr.bf16.mxu0 0
  %240 = vmatpush1.bf16.msra.mxu0 %v219
  %241 = vmatprep.subr.bf16.mxu0 0
  %242 = vmatpush1.bf16.msra.mxu0 %v220
  %243 = vmatprep.subr.bf16.mxu0 0
  %244 = vmatpush1.bf16.msra.mxu0 %v221
  %245 = vmatprep.subr.bf16.mxu0 0
  %246 = vmatpush1.bf16.msra.mxu0 %v222
  %247 = vmatprep.subr.bf16.mxu0 0
  %248 = vmatpush1.bf16.msra.mxu0 0
  %249 = vmatprep.subr.bf16.mxu0 0
  %250 = vmatpush1.bf16.msra.mxu0 0
  %251 = vmatprep.subr.bf16.mxu0 0
  %252 = vmatpush1.bf16.msra.mxu0 0
  %253 = vmatprep.subr.bf16.mxu0 0
  %254 = vmatpush1.bf16.msra.mxu0 0
  %255 = vmatprep.subr.bf16.mxu0 0
  %256 = vmatpush1.bf16.msra.mxu0 0
  %257 = vmatprep.subr.bf16.mxu0 0
  %258 = vmatpush1.bf16.msra.mxu0 0
  %259 = vmatprep.subr.bf16.mxu0 0
  %260 = vmatpush1.bf16.msra.mxu0 0
  %261 = vmatprep.subr.bf16.mxu0 0
  %262 = vmatpush1.bf16.msra.mxu0 0
  %263 = vmatprep.mubr.bf16.mxu0 0
  %264 = vmatmul.mubr.bf16.gmra.mrb[0].mxu0 %v164
  %v265 = vpop.f32.mrb[0].mxu0
  %v266 = vadd.f32 0.0, %v265
  %v267 = vpop.f32.mrb[0].mxu0
  %v268 = vpop.f32.mrb[0].mxu0
  %v269 = vpop.f32.mrb[0].mxu0
  %270 = vdwg.mxu0
  %v271 = vadd.f32 %v166, %v266
  %v272 = vxor.u32 %v271, 2147483648
  %v273 = vmul.f32 %v272, 1.442695
  %v274 = vpow.pop %v273
  %v275 = vadd.f32 %v274, 1.0
  %v276 = vrcp.pop %v275
  %v277 = vmul.f32 1.0, %v276
  %v278 = vtanh.pop %v271
  %v279 = vmul.f32 %v277, %v150
  %281 = vrot.lane.b32.xlu0 %v278, 32
  %v282 = vpop.permute.xlu0 %281
  %v284 = vmul.f32 %v277, %v282
  %286 = vrot.lane.b32.xlu0 %v284, 32
  %v287 = vpop.permute.xlu0 %286
  %v289 = vadd.f32 %v279, %v287
  %v290 = vtanh.pop %v289
  %292 = vrot.lane.b32.xlu0 %v290, 32
  %v293 = vpop.permute.xlu0 %292
  %v295 = vmul.f32 %v277, %v293
  %297 = vrot.lane.b32.xlu0 %v295, 64
  %v298 = vpop.permute.xlu0 %297
  %v300 = vsel %vm161, %v298, 0.0
  %s301 = scalar_lea.vmem [#allocation2], 8
  %302 = vst [vmem:[%s301] sm:$0xff] %v300
  %v303 = vpack.c.bf16 %v300, %v300
  %s304 = scalar_lea.vmem %s0, 16
  %v305 = vld [vmem:[%s304] sm:$0xff]
  %v306 = vld [vmem:[%s1] sm:$0xf]
  %v307 = vld [vmem:[%s1 + $0x4] sm:$0xf]
  %v308 = vld [vmem:[%s1 + $0x8] sm:$0xf]
  %v309 = vld [vmem:[%s1 + $0xc] sm:$0xf]
  %v310 = vld [vmem:[%s1 + $0x10] sm:$0xf]
  %v311 = vld [vmem:[%s1 + $0x14] sm:$0xf]
  %v312 = vld [vmem:[%s1 + $0x18] sm:$0xf]
  %v313 = vld [vmem:[%s1 + $0x1c] sm:$0xf]
  %v314 = vld [vmem:[%s1 + $0x20] sm:$0xf]
  %v315 = vld [vmem:[%s1 + $0x24] sm:$0xf]
  %v316 = vld [vmem:[%s1 + $0x28] sm:$0xf]
  %v317 = vld [vmem:[%s1 + $0x2c] sm:$0xf]
  %v318 = vld [vmem:[%s1 + $0x30] sm:$0xf]
  %v319 = vld [vmem:[%s1 + $0x34] sm:$0xf]
  %v320 = vld [vmem:[%s1 + $0x38] sm:$0xf]
  %v321 = vld [vmem:[%s1 + $0x3c] sm:$0xf]
  %v338 = vunpack.c.l.b16 %v306
  %v339 = vunpack.c.l.b16 %v307
  %v340 = vunpack.c.l.b16 %v308
  %v341 = vunpack.c.l.b16 %v309
  %v342 = vunpack.c.l.b16 %v310
  %v343 = vunpack.c.l.b16 %v311
  %v344 = vunpack.c.l.b16 %v312
  %v345 = vunpack.c.l.b16 %v313
  %v346 = vunpack.c.l.b16 %v314
  %v347 = vunpack.c.l.b16 %v315
  %v348 = vunpack.c.l.b16 %v316
  %v349 = vunpack.c.l.b16 %v317
  %v350 = vunpack.c.l.b16 %v318
  %v351 = vunpack.c.l.b16 %v319
  %v352 = vunpack.c.l.b16 %v320
  %v353 = vunpack.c.l.b16 %v321
  %v354 = vpack.c.b16 %v339, %v338
  %v355 = vpack.c.b16 %v341, %v340
  %v356 = vpack.c.b16 %v343, %v342
  %v357 = vpack.c.b16 %v345, %v344
  %v358 = vpack.c.b16 %v347, %v346
  %v359 = vpack.c.b16 %v349, %v348
  %v360 = vpack.c.b16 %v351, %v350
  %v361 = vpack.c.b16 %v353, %v352
  %370 = vmatprep.subr.bf16.mxu0 0
  %371 = vmatpush1.bf16.msra.mxu0 %v354
  %372 = vmatprep.subr.bf16.mxu0 0
  %373 = vmatpush1.bf16.msra.mxu0 %v355
  %374 = vmatprep.subr.bf16.mxu0 0
  %375 = vmatpush1.bf16.msra.mxu0 %v356
  %376 = vmatprep.subr.bf16.mxu0 0
  %377 = vmatpush1.bf16.msra.mxu0 %v357
  %378 = vmatprep.subr.bf16.mxu0 0
  %379 = vmatpush1.bf16.msra.mxu0 %v358
  %380 = vmatprep.subr.bf16.mxu0 0
  %381 = vmatpush1.bf16.msra.mxu0 %v359
  %382 = vmatprep.subr.bf16.mxu0 0
  %383 = vmatpush1.bf16.msra.mxu0 %v360
  %384 = vmatprep.subr.bf16.mxu0 0
  %385 = vmatpush1.bf16.msra.mxu0 %v361
  %386 = vmatprep.subr.bf16.mxu0 0
  %387 = vmatpush1.bf16.msra.mxu0 0
  %388 = vmatprep.subr.bf16.mxu0 0
  %389 = vmatpush1.bf16.msra.mxu0 0
  %390 = vmatprep.subr.bf16.mxu0 0
  %391 = vmatpush1.bf16.msra.mxu0 0
  %392 = vmatprep.subr.bf16.mxu0 0
  %393 = vmatpush1.bf16.msra.mxu0 0
  %394 = vmatprep.subr.bf16.mxu0 0
  %395 = vmatpush1.bf16.msra.mxu0 0
  %396 = vmatprep.subr.bf16.mxu0 0
  %397 = vmatpush1.bf16.msra.mxu0 0
  %398 = vmatprep.subr.bf16.mxu0 0
  %399 = vmatpush1.bf16.msra.mxu0 0
  %400 = vmatprep.subr.bf16.mxu0 0
  %401 = vmatpush1.bf16.msra.mxu0 0
  %402 = vmatprep.mubr.bf16.mxu0 0
  %403 = vmatmul.mubr.bf16.gmra.mrb[0].mxu0 %v303
  %v404 = vpop.f32.mrb[0].mxu0
  %v405 = vadd.f32 0.0, %v404
  %v406 = vpop.f32.mrb[0].mxu0
  %v407 = vpop.f32.mrb[0].mxu0
  %v408 = vpop.f32.mrb[0].mxu0
  %409 = vdwg.mxu0
  %v410 = vadd.f32 %v305, %v405
  %v411 = vxor.u32 %v410, 2147483648
  %v412 = vmul.f32 %v411, 1.442695
  %v413 = vpow.pop %v412
  %v414 = vadd.f32 %v413, 1.0
  %v415 = vrcp.pop %v414
  %v416 = vmul.f32 1.0, %v415
  %v417 = vtanh.pop %v410
  %v418 = vmul.f32 %v416, %v289
  %420 = vrot.lane.b32.xlu0 %v417, 32
  %v421 = vpop.permute.xlu0 %420
  %v423 = vmul.f32 %v416, %v421
  %425 = vrot.lane.b32.xlu0 %v423, 32
  %v426 = vpop.permute.xlu0 %425
  %v428 = vadd.f32 %v418, %v426
  %v429 = vtanh.pop %v428
  %431 = vrot.lane.b32.xlu0 %v429, 32
  %v432 = vpop.permute.xlu0 %431
  %v434 = vmul.f32 %v416, %v432
  %436 = vrot.lane.b32.xlu0 %v434, 64
  %v437 = vpop.permute.xlu0 %436
  %v439 = vsel %vm161, %v437, 0.0
  %s440 = scalar_lea.vmem [#allocation2], 16
  %441 = vst [vmem:[%s440] sm:$0xff] %v439
  %v442 = vpack.c.bf16 %v439, %v439
  %s443 = scalar_lea.vmem %s0, 24
  %v444 = vld [vmem:[%s443] sm:$0xff]
  %v445 = vld [vmem:[%s1] sm:$0xf]
  %v446 = vld [vmem:[%s1 + $0x4] sm:$0xf]
  %v447 = vld [vmem:[%s1 + $0x8] sm:$0xf]
  %v448 = vld [vmem:[%s1 + $0xc] sm:$0xf]
  %v449 = vld [vmem:[%s1 + $0x10] sm:$0xf]
  %v450 = vld [vmem:[%s1 + $0x14] sm:$0xf]
  %v451 = vld [vmem:[%s1 + $0x18] sm:$0xf]
  %v452 = vld [vmem:[%s1 + $0x1c] sm:$0xf]
  %v453 = vld [vmem:[%s1 + $0x20] sm:$0xf]
  %v454 = vld [vmem:[%s1 + $0x24] sm:$0xf]
  %v455 = vld [vmem:[%s1 + $0x28] sm:$0xf]
  %v456 = vld [vmem:[%s1 + $0x2c] sm:$0xf]
  %v457 = vld [vmem:[%s1 + $0x30] sm:$0xf]
  %v458 = vld [vmem:[%s1 + $0x34] sm:$0xf]
  %v459 = vld [vmem:[%s1 + $0x38] sm:$0xf]
  %v460 = vld [vmem:[%s1 + $0x3c] sm:$0xf]
  %v477 = vunpack.c.l.b16 %v445
  %v478 = vunpack.c.l.b16 %v446
  %v479 = vunpack.c.l.b16 %v447
  %v480 = vunpack.c.l.b16 %v448
  %v481 = vunpack.c.l.b16 %v449
  %v482 = vunpack.c.l.b16 %v450
  %v483 = vunpack.c.l.b16 %v451
  %v484 = vunpack.c.l.b16 %v452
  %v485 = vunpack.c.l.b16 %v453
  %v486 = vunpack.c.l.b16 %v454
  %v487 = vunpack.c.l.b16 %v455
  %v488 = vunpack.c.l.b16 %v456
  %v489 = vunpack.c.l.b16 %v457
  %v490 = vunpack.c.l.b16 %v458
  %v491 = vunpack.c.l.b16 %v459
  %v492 = vunpack.c.l.b16 %v460
  %v493 = vpack.c.b16 %v478, %v477
  %v494 = vpack.c.b16 %v480, %v479
  %v495 = vpack.c.b16 %v482, %v481
  %v496 = vpack.c.b16 %v484, %v483
  %v497 = vpack.c.b16 %v486, %v485
  %v498 = vpack.c.b16 %v488, %v487
  %v499 = vpack.c.b16 %v490, %v489
  %v500 = vpack.c.b16 %v492, %v491
  %509 = vmatprep.subr.bf16.mxu0 0
  %510 = vmatpush1.bf16.msra.mxu0 %v493
  %511 = vmatprep.subr.bf16.mxu0 0
  %512 = vmatpush1.bf16.msra.mxu0 %v494
  %513 = vmatprep.subr.bf16.mxu0 0
  %514 = vmatpush1.bf16.msra.mxu0 %v495
  %515 = vmatprep.subr.bf16.mxu0 0
  %516 = vmatpush1.bf16.msra.mxu0 %v496
  %517 = vmatprep.subr.bf16.mxu0 0
  %518 = vmatpush1.bf16.msra.mxu0 %v497
  %519 = vmatprep.subr.bf16.mxu0 0
  %520 = vmatpush1.bf16.msra.mxu0 %v498
  %521 = vmatprep.subr.bf16.mxu0 0
  %522 = vmatpush1.bf16.msra.mxu0 %v499
  %523 = vmatprep.subr.bf16.mxu0 0
  %524 = vmatpush1.bf16.msra.mxu0 %v500
  %525 = vmatprep.subr.bf16.mxu0 0
  %526 = vmatpush1.bf16.msra.mxu0 0
  %527 = vmatprep.subr.bf16.mxu0 0
  %528 = vmatpush1.bf16.msra.mxu0 0
  %529 = vmatprep.subr.bf16.mxu0 0
  %530 = vmatpush1.bf16.msra.mxu0 0
  %531 = vmatprep.subr.bf16.mxu0 0
  %532 = vmatpush1.bf16.msra.mxu0 0
  %533 = vmatprep.subr.bf16.mxu0 0
  %534 = vmatpush1.bf16.msra.mxu0 0
  %535 = vmatprep.subr.bf16.mxu0 0
  %536 = vmatpush1.bf16.msra.mxu0 0
  %537 = vmatprep.subr.bf16.mxu0 0
  %538 = vmatpush1.bf16.msra.mxu0 0
  %539 = vmatprep.subr.bf16.mxu0 0
  %540 = vmatpush1.bf16.msra.mxu0 0
  %541 = vmatprep.mubr.bf16.mxu0 0
  %542 = vmatmul.mubr.bf16.gmra.mrb[0].mxu0 %v442
  %v543 = vpop.f32.mrb[0].mxu0
  %v544 = vadd.f32 0.0, %v543
  %v545 = vpop.f32.mrb[0].mxu0
  %v546 = vpop.f32.mrb[0].mxu0
  %v547 = vpop.f32.mrb[0].mxu0
  %548 = vdwg.mxu0
  %v549 = vadd.f32 %v444, %v544
  %v550 = vxor.u32 %v549, 2147483648
  %v551 = vmul.f32 %v550, 1.442695
  %v552 = vpow.pop %v551
  %v553 = vadd.f32 %v552, 1.0
  %v554 = vrcp.pop %v553
  %v555 = vmul.f32 1.0, %v554
  %v556 = vtanh.pop %v549
  %v557 = vmul.f32 %v555, %v428
  %559 = vrot.lane.b32.xlu0 %v556, 32
  %v560 = vpop.permute.xlu0 %559
  %v562 = vmul.f32 %v555, %v560
  %564 = vrot.lane.b32.xlu0 %v562, 32
  %v565 = vpop.permute.xlu0 %564
  %v567 = vadd.f32 %v557, %v565
  %v568 = vtanh.pop %v567
  %570 = vrot.lane.b32.xlu0 %v568, 32
  %v571 = vpop.permute.xlu0 %570
  %v573 = vmul.f32 %v555, %v571
  %575 = vrot.lane.b32.xlu0 %v573, 64
  %v576 = vpop.permute.xlu0 %575
  %v578 = vsel %vm161, %v576, 0.0
  %s579 = scalar_lea.vmem [#allocation2], 24
  %580 = vst [vmem:[%s579] sm:$0xff] %v578
  %v581 = vpack.c.bf16 %v578, %v578
  %s582 = scalar_lea.vmem %s0, 32
  %v583 = vld [vmem:[%s582] sm:$0xff]
  %v584 = vld [vmem:[%s1] sm:$0xf]
  %v585 = vld [vmem:[%s1 + $0x4] sm:$0xf]
  %v586 = vld [vmem:[%s1 + $0x8] sm:$0xf]
  %v587 = vld [vmem:[%s1 + $0xc] sm:$0xf]
  %v588 = vld [vmem:[%s1 + $0x10] sm:$0xf]
  %v589 = vld [vmem:[%s1 + $0x14] sm:$0xf]
  %v590 = vld [vmem:[%s1 + $0x18] sm:$0xf]
  %v591 = vld [vmem:[%s1 + $0x1c] sm:$0xf]
  %v592 = vld [vmem:[%s1 + $0x20] sm:$0xf]
  %v593 = vld [vmem:[%s1 + $0x24] sm:$0xf]
  %v594 = vld [vmem:[%s1 + $0x28] sm:$0xf]
  %v595 = vld [vmem:[%s1 + $0x2c] sm:$0xf]
  %v596 = vld [vmem:[%s1 + $0x30] sm:$0xf]
  %v597 = vld [vmem:[%s1 + $0x34] sm:$0xf]
  %v598 = vld [vmem:[%s1 + $0x38] sm:$0xf]
  %v599 = vld [vmem:[%s1 + $0x3c] sm:$0xf]
  %v616 = vunpack.c.l.b16 %v584
  %v617 = vunpack.c.l.b16 %v585
  %v618 = vunpack.c.l.b16 %v586
  %v619 = vunpack.c.l.b16 %v587
  %v620 = vunpack.c.l.b16 %v588
  %v621 = vunpack.c.l.b16 %v589
  %v622 = vunpack.c.l.b16 %v590
  %v623 = vunpack.c.l.b16 %v591
  %v624 = vunpack.c.l.b16 %v592
  %v625 = vunpack.c.l.b16 %v593
  %v626 = vunpack.c.l.b16 %v594
  %v627 = vunpack.c.l.b16 %v595
  %v628 = vunpack.c.l.b16 %v596
  %v629 = vunpack.c.l.b16 %v597
  %v630 = vunpack.c.l.b16 %v598
  %v631 = vunpack.c.l.b16 %v599
  %v632 = vpack.c.b16 %v617, %v616
  %v633 = vpack.c.b16 %v619, %v618
  %v634 = vpack.c.b16 %v621, %v620
  %v635 = vpack.c.b16 %v623, %v622
  %v636 = vpack.c.b16 %v625, %v624
  %v637 = vpack.c.b16 %v627, %v626
  %v638 = vpack.c.b16 %v629, %v628
  %v639 = vpack.c.b16 %v631, %v630
  %648 = vmatprep.subr.bf16.mxu0 0
  %649 = vmatpush1.bf16.msra.mxu0 %v632
  %650 = vmatprep.subr.bf16.mxu0 0
  %651 = vmatpush1.bf16.msra.mxu0 %v633
  %652 = vmatprep.subr.bf16.mxu0 0
  %653 = vmatpush1.bf16.msra.mxu0 %v634
  %654 = vmatprep.subr.bf16.mxu0 0
  %655 = vmatpush1.bf16.msra.mxu0 %v635
  %656 = vmatprep.subr.bf16.mxu0 0
  %657 = vmatpush1.bf16.msra.mxu0 %v636
  %658 = vmatprep.subr.bf16.mxu0 0
  %659 = vmatpush1.bf16.msra.mxu0 %v637
  %660 = vmatprep.subr.bf16.mxu0 0
  %661 = vmatpush1.bf16.msra.mxu0 %v638
  %662 = vmatprep.subr.bf16.mxu0 0
  %663 = vmatpush1.bf16.msra.mxu0 %v639
  %664 = vmatprep.subr.bf16.mxu0 0
  %665 = vmatpush1.bf16.msra.mxu0 0
  %666 = vmatprep.subr.bf16.mxu0 0
  %667 = vmatpush1.bf16.msra.mxu0 0
  %668 = vmatprep.subr.bf16.mxu0 0
  %669 = vmatpush1.bf16.msra.mxu0 0
  %670 = vmatprep.subr.bf16.mxu0 0
  %671 = vmatpush1.bf16.msra.mxu0 0
  %672 = vmatprep.subr.bf16.mxu0 0
  %673 = vmatpush1.bf16.msra.mxu0 0
  %674 = vmatprep.subr.bf16.mxu0 0
  %675 = vmatpush1.bf16.msra.mxu0 0
  %676 = vmatprep.subr.bf16.mxu0 0
  %677 = vmatpush1.bf16.msra.mxu0 0
  %678 = vmatprep.subr.bf16.mxu0 0
  %679 = vmatpush1.bf16.msra.mxu0 0
  %680 = vmatprep.mubr.bf16.mxu0 0
  %681 = vmatmul.mubr.bf16.gmra.mrb[0].mxu0 %v581
  %v682 = vpop.f32.mrb[0].mxu0
  %v683 = vadd.f32 0.0, %v682
  %v684 = vpop.f32.mrb[0].mxu0
  %v685 = vpop.f32.mrb[0].mxu0
  %v686 = vpop.f32.mrb[0].mxu0
  %687 = vdwg.mxu0
  %v688 = vadd.f32 %v583, %v683
  %v689 = vxor.u32 %v688, 2147483648
  %v690 = vmul.f32 %v689, 1.442695
  %v691 = vpow.pop %v690
  %v692 = vadd.f32 %v691, 1.0
  %v693 = vrcp.pop %v692
  %v694 = vmul.f32 1.0, %v693
  %v695 = vtanh.pop %v688
  %v696 = vmul.f32 %v694, %v567
  %698 = vrot.lane.b32.xlu0 %v695, 32
  %v699 = vpop.permute.xlu0 %698
  %v701 = vmul.f32 %v694, %v699
  %703 = vrot.lane.b32.xlu0 %v701, 32
  %v704 = vpop.permute.xlu0 %703
  %v706 = vadd.f32 %v696, %v704
  %v707 = vtanh.pop %v706
  %709 = vrot.lane.b32.xlu0 %v707, 32
  %v710 = vpop.permute.xlu0 %709
  %v712 = vmul.f32 %v694, %v710
  %714 = vrot.lane.b32.xlu0 %v712, 64
  %v715 = vpop.permute.xlu0 %714
  %v717 = vsel %vm161, %v715, 0.0
  %s718 = scalar_lea.vmem [#allocation2], 32
  %719 = vst [vmem:[%s718] sm:$0xff] %v717
  %v720 = vpack.c.bf16 %v717, %v717
  %s721 = scalar_lea.vmem %s0, 40
  %v722 = vld [vmem:[%s721] sm:$0xff]
  %v723 = vld [vmem:[%s1] sm:$0xf]
  %v724 = vld [vmem:[%s1 + $0x4] sm:$0xf]
  %v725 = vld [vmem:[%s1 + $0x8] sm:$0xf]
  %v726 = vld [vmem:[%s1 + $0xc] sm:$0xf]
  %v727 = vld [vmem:[%s1 + $0x10] sm:$0xf]
  %v728 = vld [vmem:[%s1 + $0x14] sm:$0xf]
  %v729 = vld [vmem:[%s1 + $0x18] sm:$0xf]
  %v730 = vld [vmem:[%s1 + $0x1c] sm:$0xf]
  %v731 = vld [vmem:[%s1 + $0x20] sm:$0xf]
  %v732 = vld [vmem:[%s1 + $0x24] sm:$0xf]
  %v733 = vld [vmem:[%s1 + $0x28] sm:$0xf]
  %v734 = vld [vmem:[%s1 + $0x2c] sm:$0xf]
  %v735 = vld [vmem:[%s1 + $0x30] sm:$0xf]
  %v736 = vld [vmem:[%s1 + $0x34] sm:$0xf]
  %v737 = vld [vmem:[%s1 + $0x38] sm:$0xf]
  %v738 = vld [vmem:[%s1 + $0x3c] sm:$0xf]
  %v755 = vunpack.c.l.b16 %v723
  %v756 = vunpack.c.l.b16 %v724
  %v757 = vunpack.c.l.b16 %v725
  %v758 = vunpack.c.l.b16 %v726
  %v759 = vunpack.c.l.b16 %v727
  %v760 = vunpack.c.l.b16 %v728
  %v761 = vunpack.c.l.b16 %v729
  %v762 = vunpack.c.l.b16 %v730
  %v763 = vunpack.c.l.b16 %v731
  %v764 = vunpack.c.l.b16 %v732
  %v765 = vunpack.c.l.b16 %v733
  %v766 = vunpack.c.l.b16 %v734
  %v767 = vunpack.c.l.b16 %v735
  %v768 = vunpack.c.l.b16 %v736
  %v769 = vunpack.c.l.b16 %v737
  %v770 = vunpack.c.l.b16 %v738
  %v771 = vpack.c.b16 %v756, %v755
  %v772 = vpack.c.b16 %v758, %v757
  %v773 = vpack.c.b16 %v760, %v759
  %v774 = vpack.c.b16 %v762, %v761
  %v775 = vpack.c.b16 %v764, %v763
  %v776 = vpack.c.b16 %v766, %v765
  %v777 = vpack.c.b16 %v768, %v767
  %v778 = vpack.c.b16 %v770, %v769
  %787 = vmatprep.subr.bf16.mxu0 0
  %788 = vmatpush1.bf16.msra.mxu0 %v771
  %789 = vmatprep.subr.bf16.mxu0 0
  %790 = vmatpush1.bf16.msra.mxu0 %v772
  %791 = vmatprep.subr.bf16.mxu0 0
  %792 = vmatpush1.bf16.msra.mxu0 %v773
  %793 = vmatprep.subr.bf16.mxu0 0
  %794 = vmatpush1.bf16.msra.mxu0 %v774
  %795 = vmatprep.subr.bf16.mxu0 0
  %796 = vmatpush1.bf16.msra.mxu0 %v775
  %797 = vmatprep.subr.bf16.mxu0 0
  %798 = vmatpush1.bf16.msra.mxu0 %v776
  %799 = vmatprep.subr.bf16.mxu0 0
  %800 = vmatpush1.bf16.msra.mxu0 %v777
  %801 = vmatprep.subr.bf16.mxu0 0
  %802 = vmatpush1.bf16.msra.mxu0 %v778
  %803 = vmatprep.subr.bf16.mxu0 0
  %804 = vmatpush1.bf16.msra.mxu0 0
  %805 = vmatprep.subr.bf16.mxu0 0
  %806 = vmatpush1.bf16.msra.mxu0 0
  %807 = vmatprep.subr.bf16.mxu0 0
  %808 = vmatpush1.bf16.msra.mxu0 0
  %809 = vmatprep.subr.bf16.mxu0 0
  %810 = vmatpush1.bf16.msra.mxu0 0
  %811 = vmatprep.subr.bf16.mxu0 0
  %812 = vmatpush1.bf16.msra.mxu0 0
  %813 = vmatprep.subr.bf16.mxu0 0
  %814 = vmatpush1.bf16.msra.mxu0 0
  %815 = vmatprep.subr.bf16.mxu0 0
  %816 = vmatpush1.bf16.msra.mxu0 0
  %817 = vmatprep.subr.bf16.mxu0 0
  %818 = vmatpush1.bf16.msra.mxu0 0
  %819 = vmatprep.mubr.bf16.mxu0 0
  %820 = vmatmul.mubr.bf16.gmra.mrb[0].mxu0 %v720
  %v821 = vpop.f32.mrb[0].mxu0
  %v822 = vadd.f32 0.0, %v821
  %v823 = vpop.f32.mrb[0].mxu0
  %v824 = vpop.f32.mrb[0].mxu0
  %v825 = vpop.f32.mrb[0].mxu0
  %826 = vdwg.mxu0
  %v827 = vadd.f32 %v722, %v822
  %v828 = vxor.u32 %v827, 2147483648
  %v829 = vmul.f32 %v828, 1.442695
  %v830 = vpow.pop %v829
  %v831 = vadd.f32 %v830, 1.0
  %v832 = vrcp.pop %v831
  %v833 = vmul.f32 1.0, %v832
  %v834 = vtanh.pop %v827
  %v835 = vmul.f32 %v833, %v706
  %837 = vrot.lane.b32.xlu0 %v834, 32
  %v838 = vpop.permute.xlu0 %837
  %v840 = vmul.f32 %v833, %v838
  %842 = vrot.lane.b32.xlu0 %v840, 32
  %v843 = vpop.permute.xlu0 %842
  %v845 = vadd.f32 %v835, %v843
  %v846 = vtanh.pop %v845
  %848 = vrot.lane.b32.xlu0 %v846, 32
  %v849 = vpop.permute.xlu0 %848
  %v851 = vmul.f32 %v833, %v849
  %853 = vrot.lane.b32.xlu0 %v851, 64
  %v854 = vpop.permute.xlu0 %853
  %v856 = vsel %vm161, %v854, 0.0
  %s857 = scalar_lea.vmem [#allocation2], 40
  %858 = vst [vmem:[%s857] sm:$0xff] %v856
  %v859 = vpack.c.bf16 %v856, %v856
  %s860 = scalar_lea.vmem %s0, 48
  %v861 = vld [vmem:[%s860] sm:$0xff]
  %v862 = vld [vmem:[%s1] sm:$0xf]
  %v863 = vld [vmem:[%s1 + $0x4] sm:$0xf]
  %v864 = vld [vmem:[%s1 + $0x8] sm:$0xf]
  %v865 = vld [vmem:[%s1 + $0xc] sm:$0xf]
  %v866 = vld [vmem:[%s1 + $0x10] sm:$0xf]
  %v867 = vld [vmem:[%s1 + $0x14] sm:$0xf]
  %v868 = vld [vmem:[%s1 + $0x18] sm:$0xf]
  %v869 = vld [vmem:[%s1 + $0x1c] sm:$0xf]
  %v870 = vld [vmem:[%s1 + $0x20] sm:$0xf]
  %v871 = vld [vmem:[%s1 + $0x24] sm:$0xf]
  %v872 = vld [vmem:[%s1 + $0x28] sm:$0xf]
  %v873 = vld [vmem:[%s1 + $0x2c] sm:$0xf]
  %v874 = vld [vmem:[%s1 + $0x30] sm:$0xf]
  %v875 = vld [vmem:[%s1 + $0x34] sm:$0xf]
  %v876 = vld [vmem:[%s1 + $0x38] sm:$0xf]
  %v877 = vld [vmem:[%s1 + $0x3c] sm:$0xf]
  %v894 = vunpack.c.l.b16 %v862
  %v895 = vunpack.c.l.b16 %v863
  %v896 = vunpack.c.l.b16 %v864
  %v897 = vunpack.c.l.b16 %v865
  %v898 = vunpack.c.l.b16 %v866
  %v899 = vunpack.c.l.b16 %v867
  %v900 = vunpack.c.l.b16 %v868
  %v901 = vunpack.c.l.b16 %v869
  %v902 = vunpack.c.l.b16 %v870
  %v903 = vunpack.c.l.b16 %v871
  %v904 = vunpack.c.l.b16 %v872
  %v905 = vunpack.c.l.b16 %v873
  %v906 = vunpack.c.l.b16 %v874
  %v907 = vunpack.c.l.b16 %v875
  %v908 = vunpack.c.l.b16 %v876
  %v909 = vunpack.c.l.b16 %v877
  %v910 = vpack.c.b16 %v895, %v894
  %v911 = vpack.c.b16 %v897, %v896
  %v912 = vpack.c.b16 %v899, %v898
  %v913 = vpack.c.b16 %v901, %v900
  %v914 = vpack.c.b16 %v903, %v902
  %v915 = vpack.c.b16 %v905, %v904
  %v916 = vpack.c.b16 %v907, %v906
  %v917 = vpack.c.b16 %v909, %v908
  %926 = vmatprep.subr.bf16.mxu0 0
  %927 = vmatpush1.bf16.msra.mxu0 %v910
  %928 = vmatprep.subr.bf16.mxu0 0
  %929 = vmatpush1.bf16.msra.mxu0 %v911
  %930 = vmatprep.subr.bf16.mxu0 0
  %931 = vmatpush1.bf16.msra.mxu0 %v912
  %932 = vmatprep.subr.bf16.mxu0 0
  %933 = vmatpush1.bf16.msra.mxu0 %v913
  %934 = vmatprep.subr.bf16.mxu0 0
  %935 = vmatpush1.bf16.msra.mxu0 %v914
  %936 = vmatprep.subr.bf16.mxu0 0
  %937 = vmatpush1.bf16.msra.mxu0 %v915
  %938 = vmatprep.subr.bf16.mxu0 0
  %939 = vmatpush1.bf16.msra.mxu0 %v916
  %940 = vmatprep.subr.bf16.mxu0 0
  %941 = vmatpush1.bf16.msra.mxu0 %v917
  %942 = vmatprep.subr.bf16.mxu0 0
  %943 = vmatpush1.bf16.msra.mxu0 0
  %944 = vmatprep.subr.bf16.mxu0 0
  %945 = vmatpush1.bf16.msra.mxu0 0
  %946 = vmatprep.subr.bf16.mxu0 0
  %947 = vmatpush1.bf16.msra.mxu0 0
  %948 = vmatprep.subr.bf16.mxu0 0
  %949 = vmatpush1.bf16.msra.mxu0 0
  %950 = vmatprep.subr.bf16.mxu0 0
  %951 = vmatpush1.bf16.msra.mxu0 0
  %952 = vmatprep.subr.bf16.mxu0 0
  %953 = vmatpush1.bf16.msra.mxu0 0
  %954 = vmatprep.subr.bf16.mxu0 0
  %955 = vmatpush1.bf16.msra.mxu0 0
  %956 = vmatprep.subr.bf16.mxu0 0
  %957 = vmatpush1.bf16.msra.mxu0 0
  %958 = vmatprep.mubr.bf16.mxu0 0
  %959 = vmatmul.mubr.bf16.gmra.mrb[0].mxu0 %v859
  %v960 = vpop.f32.mrb[0].mxu0
  %v961 = vadd.f32 0.0, %v960
  %v962 = vpop.f32.mrb[0].mxu0
  %v963 = vpop.f32.mrb[0].mxu0
  %v964 = vpop.f32.mrb[0].mxu0
  %965 = vdwg.mxu0
  %v966 = vadd.f32 %v861, %v961
  %v967 = vxor.u32 %v966, 2147483648
  %v968 = vmul.f32 %v967, 1.442695
  %v969 = vpow.pop %v968
  %v970 = vadd.f32 %v969, 1.0
  %v971 = vrcp.pop %v970
  %v972 = vmul.f32 1.0, %v971
  %v973 = vtanh.pop %v966
  %v974 = vmul.f32 %v972, %v845
  %976 = vrot.lane.b32.xlu0 %v973, 32
  %v977 = vpop.permute.xlu0 %976
  %v979 = vmul.f32 %v972, %v977
  %981 = vrot.lane.b32.xlu0 %v979, 32
  %v982 = vpop.permute.xlu0 %981
  %v984 = vadd.f32 %v974, %v982
  %v985 = vtanh.pop %v984
  %987 = vrot.lane.b32.xlu0 %v985, 32
  %v988 = vpop.permute.xlu0 %987
  %v990 = vmul.f32 %v972, %v988
  %992 = vrot.lane.b32.xlu0 %v990, 64
  %v993 = vpop.permute.xlu0 %992
  %v995 = vsel %vm161, %v993, 0.0
  %s996 = scalar_lea.vmem [#allocation2], 48
  %997 = vst [vmem:[%s996] sm:$0xff] %v995
  %v998 = vpack.c.bf16 %v995, %v995
  %s999 = scalar_lea.vmem %s0, 56
  %v1000 = vld [vmem:[%s999] sm:$0xff]
  %v1001 = vld [vmem:[%s1] sm:$0xf]
  %v1002 = vld [vmem:[%s1 + $0x4] sm:$0xf]
  %v1003 = vld [vmem:[%s1 + $0x8] sm:$0xf]
  %v1004 = vld [vmem:[%s1 + $0xc] sm:$0xf]
  %v1005 = vld [vmem:[%s1 + $0x10] sm:$0xf]
  %v1006 = vld [vmem:[%s1 + $0x14] sm:$0xf]
  %v1007 = vld [vmem:[%s1 + $0x18] sm:$0xf]
  %v1008 = vld [vmem:[%s1 + $0x1c] sm:$0xf]
  %v1009 = vld [vmem:[%s1 + $0x20] sm:$0xf]
  %v1010 = vld [vmem:[%s1 + $0x24] sm:$0xf]
  %v1011 = vld [vmem:[%s1 + $0x28] sm:$0xf]
  %v1012 = vld [vmem:[%s1 + $0x2c] sm:$0xf]
  %v1013 = vld [vmem:[%s1 + $0x30] sm:$0xf]
  %v1014 = vld [vmem:[%s1 + $0x34] sm:$0xf]
  %v1015 = vld [vmem:[%s1 + $0x38] sm:$0xf]
  %v1016 = vld [vmem:[%s1 + $0x3c] sm:$0xf]
  %v1033 = vunpack.c.l.b16 %v1001
  %v1034 = vunpack.c.l.b16 %v1002
  %v1035 = vunpack.c.l.b16 %v1003
  %v1036 = vunpack.c.l.b16 %v1004
  %v1037 = vunpack.c.l.b16 %v1005
  %v1038 = vunpack.c.l.b16 %v1006
  %v1039 = vunpack.c.l.b16 %v1007
  %v1040 = vunpack.c.l.b16 %v1008
  %v1041 = vunpack.c.l.b16 %v1009
  %v1042 = vunpack.c.l.b16 %v1010
  %v1043 = vunpack.c.l.b16 %v1011
  %v1044 = vunpack.c.l.b16 %v1012
  %v1045 = vunpack.c.l.b16 %v1013
  %v1046 = vunpack.c.l.b16 %v1014
  %v1047 = vunpack.c.l.b16 %v1015
  %v1048 = vunpack.c.l.b16 %v1016
  %v1049 = vpack.c.b16 %v1034, %v1033
  %v1050 = vpack.c.b16 %v1036, %v1035
  %v1051 = vpack.c.b16 %v1038, %v1037
  %v1052 = vpack.c.b16 %v1040, %v1039
  %v1053 = vpack.c.b16 %v1042, %v1041
  %v1054 = vpack.c.b16 %v1044, %v1043
  %v1055 = vpack.c.b16 %v1046, %v1045
  %v1056 = vpack.c.b16 %v1048, %v1047
  %1065 = vmatprep.subr.bf16.mxu0 0
  %1066 = vmatpush1.bf16.msra.mxu0 %v1049
  %1067 = vmatprep.subr.bf16.mxu0 0
  %1068 = vmatpush1.bf16.msra.mxu0 %v1050
  %1069 = vmatprep.subr.bf16.mxu0 0
  %1070 = vmatpush1.bf16.msra.mxu0 %v1051
  %1071 = vmatprep.subr.bf16.mxu0 0
  %1072 = vmatpush1.bf16.msra.mxu0 %v1052
  %1073 = vmatprep.subr.bf16.mxu0 0
  %1074 = vmatpush1.bf16.msra.mxu0 %v1053
  %1075 = vmatprep.subr.bf16.mxu0 0
  %1076 = vmatpush1.bf16.msra.mxu0 %v1054
  %1077 = vmatprep.subr.bf16.mxu0 0
  %1078 = vmatpush1.bf16.msra.mxu0 %v1055
  %1079 = vmatprep.subr.bf16.mxu0 0
  %1080 = vmatpush1.bf16.msra.mxu0 %v1056
  %1081 = vmatprep.subr.bf16.mxu0 0
  %1082 = vmatpush1.bf16.msra.mxu0 0
  %1083 = vmatprep.subr.bf16.mxu0 0
  %1084 = vmatpush1.bf16.msra.mxu0 0
  %1085 = vmatprep.subr.bf16.mxu0 0
  %1086 = vmatpush1.bf16.msra.mxu0 0
  %1087 = vmatprep.subr.bf16.mxu0 0
  %1088 = vmatpush1.bf16.msra.mxu0 0
  %1089 = vmatprep.subr.bf16.mxu0 0
  %1090 = vmatpush1.bf16.msra.mxu0 0
  %1091 = vmatprep.subr.bf16.mxu0 0
  %1092 = vmatpush1.bf16.msra.mxu0 0
  %1093 = vmatprep.subr.bf16.mxu0 0
  %1094 = vmatpush1.bf16.msra.mxu0 0
  %1095 = vmatprep.subr.bf16.mxu0 0
  %1096 = vmatpush1.bf16.msra.mxu0 0
  %1097 = vmatprep.mubr.bf16.mxu0 0
  %1098 = vmatmul.mubr.bf16.gmra.mrb[0].mxu0 %v998
  %v1099 = vpop.f32.mrb[0].mxu0
  %v1100 = vadd.f32 0.0, %v1099
  %v1101 = vpop.f32.mrb[0].mxu0
  %v1102 = vpop.f32.mrb[0].mxu0
  %v1103 = vpop.f32.mrb[0].mxu0
  %1104 = vdwg.mxu0
  %v1105 = vadd.f32 %v1000, %v1100
  %v1106 = vxor.u32 %v1105, 2147483648
  %v1107 = vmul.f32 %v1106, 1.442695
  %v1108 = vpow.pop %v1107
  %v1109 = vadd.f32 %v1108, 1.0
  %v1110 = vrcp.pop %v1109
  %v1111 = vmul.f32 1.0, %v1110
  %v1112 = vtanh.pop %v1105
  %v1113 = vmul.f32 %v1111, %v984
  %1115 = vrot.lane.b32.xlu0 %v1112, 32
  %v1116 = vpop.permute.xlu0 %1115
  %v1118 = vmul.f32 %v1111, %v1116
  %1120 = vrot.lane.b32.xlu0 %v1118, 32
  %v1121 = vpop.permute.xlu0 %1120
  %v1123 = vadd.f32 %v1113, %v1121
  %v1124 = vtanh.pop %v1123
  %1126 = vrot.lane.b32.xlu0 %v1124, 32
  %v1127 = vpop.permute.xlu0 %1126
  %v1129 = vmul.f32 %v1111, %v1127
  %1131 = vrot.lane.b32.xlu0 %v1129, 64
  %v1132 = vpop.permute.xlu0 %1131
  %v1134 = vsel %vm161, %v1132, 0.0
  %s1135 = scalar_lea.vmem [#allocation2], 56
  %1136 = vst [vmem:[%s1135] sm:$0xff] %v1134
  %v1137 = vld [vmem:[#allocation2] sm:$0xff]
  %v1138 = vld [vmem:[#allocation2 + $0x8] sm:$0xff]
  %v1139 = vld [vmem:[#allocation2 + $0x10] sm:$0xff]
  %v1140 = vld [vmem:[#allocation2 + $0x18] sm:$0xff]
  %v1141 = vld [vmem:[#allocation2 + $0x20] sm:$0xff]
  %v1142 = vld [vmem:[#allocation2 + $0x28] sm:$0xff]
  %v1143 = vld [vmem:[#allocation2 + $0x30] sm:$0xff]
  %v1144 = vld [vmem:[#allocation2 + $0x38] sm:$0xff]
  %v1145 = vpack.c.bf16 %v1138, %v1137
  %v1146 = vpack.c.bf16 %v1140, %v1139
  %v1147 = vpack.c.bf16 %v1142, %v1141
  %v1148 = vpack.c.bf16 %v1144, %v1143
  %v1149 = vld [vmem:[%s2] sm:$0xf]
  %v1150 = vld [vmem:[%s2 + $0x4] sm:$0xf]
  %v1151 = vld [vmem:[%s2 + $0x8] sm:$0xf]
  %v1152 = vld [vmem:[%s2 + $0xc] sm:$0xf]
  %v1153 = vld [vmem:[%s2 + $0x10] sm:$0xf]
  %v1154 = vld [vmem:[%s2 + $0x14] sm:$0xf]
  %v1155 = vld [vmem:[%s2 + $0x18] sm:$0xf]
  %v1156 = vld [vmem:[%s2 + $0x1c] sm:$0xf]
  %v1157 = vld [vmem:[%s2 + $0x20] sm:$0xf]
  %v1158 = vld [vmem:[%s2 + $0x24] sm:$0xf]
  %v1159 = vld [vmem:[%s2 + $0x28] sm:$0xf]
  %v1160 = vld [vmem:[%s2 + $0x2c] sm:$0xf]
  %v1161 = vld [vmem:[%s2 + $0x30] sm:$0xf]
  %v1162 = vld [vmem:[%s2 + $0x34] sm:$0xf]
  %v1163 = vld [vmem:[%s2 + $0x38] sm:$0xf]
  %v1164 = vld [vmem:[%s2 + $0x3c] sm:$0xf]
  %v1165 = vld [vmem:[%s4] sm:$0x1]
  %v1167 = vlaneseq
  %v1168 = vshrl.u32 %v1167, 7
  %v1169 = vsub.s32 0, %v1168
  %v1170 = vrot.slane %v1165, %v1169
  %v1188 = vunpack.c.l.b16 %v1149
  %v1189 = vunpack.c.l.b16 %v1150
  %v1190 = vunpack.c.l.b16 %v1151
  %v1191 = vunpack.c.l.b16 %v1152
  %v1192 = vunpack.c.l.b16 %v1153
  %v1193 = vunpack.c.l.b16 %v1154
  %v1194 = vunpack.c.l.b16 %v1155
  %v1195 = vunpack.c.l.b16 %v1156
  %v1196 = vunpack.c.l.b16 %v1157
  %v1197 = vunpack.c.l.b16 %v1158
  %v1198 = vunpack.c.l.b16 %v1159
  %v1199 = vunpack.c.l.b16 %v1160
  %v1200 = vunpack.c.l.b16 %v1161
  %v1201 = vunpack.c.l.b16 %v1162
  %v1202 = vunpack.c.l.b16 %v1163
  %v1203 = vunpack.c.l.b16 %v1164
  %v1204 = vpack.c.b16 %v1189, %v1188
  %v1205 = vpack.c.b16 %v1191, %v1190
  %v1206 = vpack.c.b16 %v1193, %v1192
  %v1207 = vpack.c.b16 %v1195, %v1194
  %v1208 = vpack.c.b16 %v1197, %v1196
  %v1209 = vpack.c.b16 %v1199, %v1198
  %v1210 = vpack.c.b16 %v1201, %v1200
  %v1211 = vpack.c.b16 %v1203, %v1202
  %1220 = vmatprep.subr.bf16.mxu0 0
  %1221 = vmatpush1.bf16.msra.mxu0 %v1204
  %1222 = vmatprep.subr.bf16.mxu0 0
  %1223 = vmatpush1.bf16.msra.mxu0 %v1205
  %1224 = vmatprep.subr.bf16.mxu0 0
  %1225 = vmatpush1.bf16.msra.mxu0 %v1206
  %1226 = vmatprep.subr.bf16.mxu0 0
  %1227 = vmatpush1.bf16.msra.mxu0 %v1207
  %1228 = vmatprep.subr.bf16.mxu0 0
  %1229 = vmatpush1.bf16.msra.mxu0 %v1208
  %1230 = vmatprep.subr.bf16.mxu0 0
  %1231 = vmatpush1.bf16.msra.mxu0 %v1209
  %1232 = vmatprep.subr.bf16.mxu0 0
  %1233 = vmatpush1.bf16.msra.mxu0 %v1210
  %1234 = vmatprep.subr.bf16.mxu0 0
  %1235 = vmatpush1.bf16.msra.mxu0 %v1211
  %1236 = vmatprep.subr.bf16.mxu0 0
  %1237 = vmatpush1.bf16.msra.mxu0 0
  %1238 = vmatprep.subr.bf16.mxu0 0
  %1239 = vmatpush1.bf16.msra.mxu0 0
  %1240 = vmatprep.subr.bf16.mxu0 0
  %1241 = vmatpush1.bf16.msra.mxu0 0
  %1242 = vmatprep.subr.bf16.mxu0 0
  %1243 = vmatpush1.bf16.msra.mxu0 0
  %1244 = vmatprep.subr.bf16.mxu0 0
  %1245 = vmatpush1.bf16.msra.mxu0 0
  %1246 = vmatprep.subr.bf16.mxu0 0
  %1247 = vmatpush1.bf16.msra.mxu0 0
  %1248 = vmatprep.subr.bf16.mxu0 0
  %1249 = vmatpush1.bf16.msra.mxu0 0
  %1250 = vmatprep.subr.bf16.mxu0 0
  %1251 = vmatpush1.bf16.msra.mxu0 0
  %1252 = vmatprep.mubr.bf16.mxu0 0
  %1253 = vmatmul.mubr.bf16.gmra.mrb[0].mxu0 %v1145
  %v1254 = vpop.f32.mrb[0].mxu0
  %v1255 = vadd.f32 %v1170, %v1254
  %v1256 = vpop.f32.mrb[0].mxu0
  %v1257 = vpop.f32.mrb[0].mxu0
  %v1258 = vadd.f32 %v1170, %v1257
  %v1259 = vpop.f32.mrb[0].mxu0
  %1260 = vmatprep.mubr.bf16.mxu0 0
  %1261 = vmatmul.mubr.bf16.gmra.mrb[0].mxu0 %v1146
  %v1262 = vpop.f32.mrb[0].mxu0
  %v1263 = vadd.f32 %v1170, %v1262
  %v1264 = vpop.f32.mrb[0].mxu0
  %v1265 = vpop.f32.mrb[0].mxu0
  %v1266 = vadd.f32 %v1170, %v1265
  %v1267 = vpop.f32.mrb[0].mxu0
  %1268 = vmatprep.mubr.bf16.mxu0 0
  %1269 = vmatmul.mubr.bf16.gmra.mrb[0].mxu0 %v1147
  %v1270 = vpop.f32.mrb[0].mxu0
  %v1271 = vadd.f32 %v1170, %v1270
  %v1272 = vpop.f32.mrb[0].mxu0
  %v1273 = vpop.f32.mrb[0].mxu0
  %v1274 = vadd.f32 %v1170, %v1273
  %v1275 = vpop.f32.mrb[0].mxu0
  %1276 = vmatprep.mubr.bf16.mxu0 0
  %1277 = vmatmul.mubr.bf16.gmra.mrb[0].mxu0 %v1148
  %v1278 = vpop.f32.mrb[0].mxu0
  %v1279 = vadd.f32 %v1170, %v1278
  %v1280 = vpop.f32.mrb[0].mxu0
  %v1281 = vpop.f32.mrb[0].mxu0
  %v1282 = vadd.f32 %v1170, %v1281
  %v1283 = vpop.f32.mrb[0].mxu0
  %1284 = vdwg.mxu0
  %1285 = vst [vmem:[#allocation3] sm:$0xff] %v1255
  %1286 = vst [vmem:[#allocation3 + $0x8] sm:$0xff] %v1258
  %1287 = vst [vmem:[#allocation3 + $0x10] sm:$0xff] %v1263
  %1288 = vst [vmem:[#allocation3 + $0x18] sm:$0xff] %v1266
  %1289 = vst [vmem:[#allocation3 + $0x20] sm:$0xff] %v1271
  %1290 = vst [vmem:[#allocation3 + $0x28] sm:$0xff] %v1274
  %1291 = vst [vmem:[#allocation3 + $0x30] sm:$0xff] %v1279
  %1292 = vst [vmem:[#allocation3 + $0x38] sm:$0xff] %v1282
  %v1293 = vld [vmem:[#allocation3] sm:$0xff]
  %v1294 = vld [vmem:[%s3] sm:$0xf]
  %v1295 = vld [vmem:[%s3 + $0x4] sm:$0xf]
  %v1296 = vld [vmem:[%s3 + $0x8] sm:$0xf]
  %v1297 = vld [vmem:[%s3 + $0xc] sm:$0xf]
  %v1298 = vld [vmem:[%s3 + $0x10] sm:$0xf]
  %v1299 = vld [vmem:[%s3 + $0x14] sm:$0xf]
  %v1300 = vld [vmem:[%s3 + $0x18] sm:$0xf]
  %v1301 = vld [vmem:[%s3 + $0x1c] sm:$0xf]
  %v1302 = vld [vmem:[%s3 + $0x20] sm:$0xf]
  %v1303 = vld [vmem:[%s3 + $0x24] sm:$0xf]
  %v1304 = vld [vmem:[%s3 + $0x28] sm:$0xf]
  %v1305 = vld [vmem:[%s3 + $0x2c] sm:$0xf]
  %v1306 = vld [vmem:[%s3 + $0x30] sm:$0xf]
  %v1307 = vld [vmem:[%s3 + $0x34] sm:$0xf]
  %v1308 = vld [vmem:[%s3 + $0x38] sm:$0xf]
  %v1309 = vld [vmem:[%s3 + $0x3c] sm:$0xf]
  %v1326 = vunpack.c.l.b16 %v1294
  %v1327 = vunpack.c.l.b16 %v1295
  %v1328 = vunpack.c.l.b16 %v1296
  %v1329 = vunpack.c.l.b16 %v1297
  %v1330 = vunpack.c.l.b16 %v1298
  %v1331 = vunpack.c.l.b16 %v1299
  %v1332 = vunpack.c.l.b16 %v1300
  %v1333 = vunpack.c.l.b16 %v1301
  %v1334 = vunpack.c.l.b16 %v1302
  %v1335 = vunpack.c.l.b16 %v1303
  %v1336 = vunpack.c.l.b16 %v1304
  %v1337 = vunpack.c.l.b16 %v1305
  %v1338 = vunpack.c.l.b16 %v1306
  %v1339 = vunpack.c.l.b16 %v1307
  %v1340 = vunpack.c.l.b16 %v1308
  %v1341 = vunpack.c.l.b16 %v1309
  %v1342 = vpack.c.b16 %v1327, %v1326
  %v1343 = vpack.c.b16 %v1329, %v1328
  %v1344 = vpack.c.b16 %v1331, %v1330
  %v1345 = vpack.c.b16 %v1333, %v1332
  %v1346 = vpack.c.b16 %v1335, %v1334
  %v1347 = vpack.c.b16 %v1337, %v1336
  %v1348 = vpack.c.b16 %v1339, %v1338
  %v1349 = vpack.c.b16 %v1341, %v1340
  %1358 = vmatprep.subr.bf16.mxu0 0
  %1359 = vmatpush1.bf16.msra.mxu0 %v1342
  %1360 = vmatprep.subr.bf16.mxu0 0
  %1361 = vmatpush1.bf16.msra.mxu0 %v1343
  %1362 = vmatprep.subr.bf16.mxu0 0
  %1363 = vmatpush1.bf16.msra.mxu0 %v1344
  %1364 = vmatprep.subr.bf16.mxu0 0
  %1365 = vmatpush1.bf16.msra.mxu0 %v1345
  %1366 = vmatprep.subr.bf16.mxu0 0
  %1367 = vmatpush1.bf16.msra.mxu0 %v1346
  %1368 = vmatprep.subr.bf16.mxu0 0
  %1369 = vmatpush1.bf16.msra.mxu0 %v1347
  %1370 = vmatprep.subr.bf16.mxu0 0
  %1371 = vmatpush1.bf16.msra.mxu0 %v1348
  %1372 = vmatprep.subr.bf16.mxu0 0
  %1373 = vmatpush1.bf16.msra.mxu0 %v1349
  %1374 = vmatprep.subr.bf16.mxu0 0
  %1375 = vmatpush1.bf16.msra.mxu0 0
  %1376 = vmatprep.subr.bf16.mxu0 0
  %1377 = vmatpush1.bf16.msra.mxu0 0
  %1378 = vmatprep.subr.bf16.mxu0 0
  %1379 = vmatpush1.bf16.msra.mxu0 0
  %1380 = vmatprep.subr.bf16.mxu0 0
  %1381 = vmatpush1.bf16.msra.mxu0 0
  %1382 = vmatprep.subr.bf16.mxu0 0
  %1383 = vmatpush1.bf16.msra.mxu0 0
  %1384 = vmatprep.subr.bf16.mxu0 0
  %1385 = vmatpush1.bf16.msra.mxu0 0
  %1386 = vmatprep.subr.bf16.mxu0 0
  %1387 = vmatpush1.bf16.msra.mxu0 0
  %1388 = vmatprep.subr.bf16.mxu0 0
  %1389 = vmatpush1.bf16.msra.mxu0 0
  %1390 = vmatprep.mubr.bf16.mxu0 0
  %1391 = vmatmul.mubr.bf16.gmra.mrb[0].mxu0 0
  %v1392 = vpop.f32.mrb[0].mxu0
  %v1393 = vadd.f32 0.0, %v1392
  %v1394 = vpop.f32.mrb[0].mxu0
  %v1395 = vpop.f32.mrb[0].mxu0
  %v1396 = vpop.f32.mrb[0].mxu0
  %1397 = vdwg.mxu0
  %v1398 = vadd.f32 %v1293, %v1393
  %v1399 = vxor.u32 %v1398, 2147483648
  %v1400 = vmul.f32 %v1399, 1.442695
  %v1401 = vpow.pop %v1400
  %v1402 = vadd.f32 %v1401, 1.0
  %v1403 = vrcp.pop %v1402
  %v1404 = vmul.f32 1.0, %v1403
  %v1405 = vtanh.pop %v1398
  %v1406 = vmul.f32 %v1404, 0.0
  %1408 = vrot.lane.b32.xlu0 %v1405, 32
  %v1409 = vpop.permute.xlu0 %1408
  %v1411 = vmul.f32 %v1404, %v1409
  %1413 = vrot.lane.b32.xlu0 %v1411, 32
  %v1414 = vpop.permute.xlu0 %1413
  %v1416 = vadd.f32 %v1406, %v1414
  %v1417 = vtanh.pop %v1416
  %1419 = vrot.lane.b32.xlu0 %v1417, 32
  %v1420 = vpop.permute.xlu0 %1419
  %v1422 = vmul.f32 %v1404, %v1420
  %1424 = vrot.lane.b32.xlu0 %v1422, 64
  %v1425 = vpop.permute.xlu0 %1424
  %v1427 = vsel %vm161, %v1425, 0.0
  %v1428 = vpack.c.bf16 %v1427, %v1427
  %s1429 = scalar_lea.vmem [#allocation3], 8
  %v1430 = vld [vmem:[%s1429] sm:$0xff]
  %1431 = vmatprep.subr.bf16.mxu0 0
  %1432 = vmatpush1.bf16.msra.mxu0 %v1342
  %1433 = vmatprep.subr.bf16.mxu0 0
  %1434 = vmatpush1.bf16.msra.mxu0 %v1343
  %1435 = vmatprep.subr.bf16.mxu0 0
  %1436 = vmatpush1.bf16.msra.mxu0 %v1344
  %1437 = vmatprep.subr.bf16.mxu0 0
  %1438 = vmatpush1.bf16.msra.mxu0 %v1345
  %1439 = vmatprep.subr.bf16.mxu0 0
  %1440 = vmatpush1.bf16.msra.mxu0 %v1346
  %1441 = vmatprep.subr.bf16.mxu0 0
  %1442 = vmatpush1.bf16.msra.mxu0 %v1347
  %1443 = vmatprep.subr.bf16.mxu0 0
  %1444 = vmatpush1.bf16.msra.mxu0 %v1348
  %1445 = vmatprep.subr.bf16.mxu0 0
  %1446 = vmatpush1.bf16.msra.mxu0 %v1349
  %1447 = vmatprep.subr.bf16.mxu0 0
  %1448 = vmatpush1.bf16.msra.mxu0 0
  %1449 = vmatprep.subr.bf16.mxu0 0
  %1450 = vmatpush1.bf16.msra.mxu0 0
  %1451 = vmatprep.subr.bf16.mxu0 0
  %1452 = vmatpush1.bf16.msra.mxu0 0
  %1453 = vmatprep.subr.bf16.mxu0 0
  %1454 = vmatpush1.bf16.msra.mxu0 0
  %1455 = vmatprep.subr.bf16.mxu0 0
  %1456 = vmatpush1.bf16.msra.mxu0 0
  %1457 = vmatprep.subr.bf16.mxu0 0
  %1458 = vmatpush1.bf16.msra.mxu0 0
  %1459 = vmatprep.subr.bf16.mxu0 0
  %1460 = vmatpush1.bf16.msra.mxu0 0
  %1461 = vmatprep.subr.bf16.mxu0 0
  %1462 = vmatpush1.bf16.msra.mxu0 0
  %1463 = vmatprep.mubr.bf16.mxu0 0
  %1464 = vmatmul.mubr.bf16.gmra.mrb[0].mxu0 %v1428
  %v1465 = vpop.f32.mrb[0].mxu0
  %v1466 = vadd.f32 0.0, %v1465
  %v1467 = vpop.f32.mrb[0].mxu0
  %v1468 = vpop.f32.mrb[0].mxu0
  %v1469 = vpop.f32.mrb[0].mxu0
  %1470 = vdwg.mxu0
  %v1471 = vadd.f32 %v1430, %v1466
  %v1472 = vxor.u32 %v1471, 2147483648
  %v1473 = vmul.f32 %v1472, 1.442695
  %v1474 = vpow.pop %v1473
  %v1475 = vadd.f32 %v1474, 1.0
  %v1476 = vrcp.pop %v1475
  %v1477 = vmul.f32 1.0, %v1476
  %v1478 = vtanh.pop %v1471
  %v1479 = vmul.f32 %v1477, %v1416
  %1481 = vrot.lane.b32.xlu0 %v1478, 32
  %v1482 = vpop.permute.xlu0 %1481
  %v1484 = vmul.f32 %v1477, %v1482
  %1486 = vrot.lane.b32.xlu0 %v1484, 32
  %v1487 = vpop.permute.xlu0 %1486
  %v1489 = vadd.f32 %v1479, %v1487
  %v1490 = vtanh.pop %v1489
  %1492 = vrot.lane.b32.xlu0 %v1490, 32
  %v1493 = vpop.permute.xlu0 %1492
  %v1495 = vmul.f32 %v1477, %v1493
  %1497 = vrot.lane.b32.xlu0 %v1495, 64
  %v1498 = vpop.permute.xlu0 %1497
  %v1500 = vsel %vm161, %v1498, 0.0
  %v1501 = vpack.c.bf16 %v1500, %v1500
  %s1502 = scalar_lea.vmem [#allocation3], 16
  %v1503 = vld [vmem:[%s1502] sm:$0xff]
  %1504 = vmatprep.subr.bf16.mxu0 0
  %1505 = vmatpush1.bf16.msra.mxu0 %v1342
  %1506 = vmatprep.subr.bf16.mxu0 0
  %1507 = vmatpush1.bf16.msra.mxu0 %v1343
  %1508 = vmatprep.subr.bf16.mxu0 0
  %1509 = vmatpush1.bf16.msra.mxu0 %v1344
  %1510 = vmatprep.subr.bf16.mxu0 0
  %1511 = vmatpush1.bf16.msra.mxu0 %v1345
  %1512 = vmatprep.subr.bf16.mxu0 0
  %1513 = vmatpush1.bf16.msra.mxu0 %v1346
  %1514 = vmatprep.subr.bf16.mxu0 0
  %1515 = vmatpush1.bf16.msra.mxu0 %v1347
  %1516 = vmatprep.subr.bf16.mxu0 0
  %1517 = vmatpush1.bf16.msra.mxu0 %v1348
  %1518 = vmatprep.subr.bf16.mxu0 0
  %1519 = vmatpush1.bf16.msra.mxu0 %v1349
  %1520 = vmatprep.subr.bf16.mxu0 0
  %1521 = vmatpush1.bf16.msra.mxu0 0
  %1522 = vmatprep.subr.bf16.mxu0 0
  %1523 = vmatpush1.bf16.msra.mxu0 0
  %1524 = vmatprep.subr.bf16.mxu0 0
  %1525 = vmatpush1.bf16.msra.mxu0 0
  %1526 = vmatprep.subr.bf16.mxu0 0
  %1527 = vmatpush1.bf16.msra.mxu0 0
  %1528 = vmatprep.subr.bf16.mxu0 0
  %1529 = vmatpush1.bf16.msra.mxu0 0
  %1530 = vmatprep.subr.bf16.mxu0 0
  %1531 = vmatpush1.bf16.msra.mxu0 0
  %1532 = vmatprep.subr.bf16.mxu0 0
  %1533 = vmatpush1.bf16.msra.mxu0 0
  %1534 = vmatprep.subr.bf16.mxu0 0
  %1535 = vmatpush1.bf16.msra.mxu0 0
  %1536 = vmatprep.mubr.bf16.mxu0 0
  %1537 = vmatmul.mubr.bf16.gmra.mrb[0].mxu0 %v1501
  %v1538 = vpop.f32.mrb[0].mxu0
  %v1539 = vadd.f32 0.0, %v1538
  %v1540 = vpop.f32.mrb[0].mxu0
  %v1541 = vpop.f32.mrb[0].mxu0
  %v1542 = vpop.f32.mrb[0].mxu0
  %1543 = vdwg.mxu0
  %v1544 = vadd.f32 %v1503, %v1539
  %v1545 = vxor.u32 %v1544, 2147483648
  %v1546 = vmul.f32 %v1545, 1.442695
  %v1547 = vpow.pop %v1546
  %v1548 = vadd.f32 %v1547, 1.0
  %v1549 = vrcp.pop %v1548
  %v1550 = vmul.f32 1.0, %v1549
  %v1551 = vtanh.pop %v1544
  %v1552 = vmul.f32 %v1550, %v1489
  %1554 = vrot.lane.b32.xlu0 %v1551, 32
  %v1555 = vpop.permute.xlu0 %1554
  %v1557 = vmul.f32 %v1550, %v1555
  %1559 = vrot.lane.b32.xlu0 %v1557, 32
  %v1560 = vpop.permute.xlu0 %1559
  %v1562 = vadd.f32 %v1552, %v1560
  %v1563 = vtanh.pop %v1562
  %1565 = vrot.lane.b32.xlu0 %v1563, 32
  %v1566 = vpop.permute.xlu0 %1565
  %v1568 = vmul.f32 %v1550, %v1566
  %1570 = vrot.lane.b32.xlu0 %v1568, 64
  %v1571 = vpop.permute.xlu0 %1570
  %v1573 = vsel %vm161, %v1571, 0.0
  %v1574 = vpack.c.bf16 %v1573, %v1573
  %s1575 = scalar_lea.vmem [#allocation3], 24
  %v1576 = vld [vmem:[%s1575] sm:$0xff]
  %1577 = vmatprep.subr.bf16.mxu0 0
  %1578 = vmatpush1.bf16.msra.mxu0 %v1342
  %1579 = vmatprep.subr.bf16.mxu0 0
  %1580 = vmatpush1.bf16.msra.mxu0 %v1343
  %1581 = vmatprep.subr.bf16.mxu0 0
  %1582 = vmatpush1.bf16.msra.mxu0 %v1344
  %1583 = vmatprep.subr.bf16.mxu0 0
  %1584 = vmatpush1.bf16.msra.mxu0 %v1345
  %1585 = vmatprep.subr.bf16.mxu0 0
  %1586 = vmatpush1.bf16.msra.mxu0 %v1346
  %1587 = vmatprep.subr.bf16.mxu0 0
  %1588 = vmatpush1.bf16.msra.mxu0 %v1347
  %1589 = vmatprep.subr.bf16.mxu0 0
  %1590 = vmatpush1.bf16.msra.mxu0 %v1348
  %1591 = vmatprep.subr.bf16.mxu0 0
  %1592 = vmatpush1.bf16.msra.mxu0 %v1349
  %1593 = vmatprep.subr.bf16.mxu0 0
  %1594 = vmatpush1.bf16.msra.mxu0 0
  %1595 = vmatprep.subr.bf16.mxu0 0
  %1596 = vmatpush1.bf16.msra.mxu0 0
  %1597 = vmatprep.subr.bf16.mxu0 0
  %1598 = vmatpush1.bf16.msra.mxu0 0
  %1599 = vmatprep.subr.bf16.mxu0 0
  %1600 = vmatpush1.bf16.msra.mxu0 0
  %1601 = vmatprep.subr.bf16.mxu0 0
  %1602 = vmatpush1.bf16.msra.mxu0 0
  %1603 = vmatprep.subr.bf16.mxu0 0
  %1604 = vmatpush1.bf16.msra.mxu0 0
  %1605 = vmatprep.subr.bf16.mxu0 0
  %1606 = vmatpush1.bf16.msra.mxu0 0
  %1607 = vmatprep.subr.bf16.mxu0 0
  %1608 = vmatpush1.bf16.msra.mxu0 0
  %1609 = vmatprep.mubr.bf16.mxu0 0
  %1610 = vmatmul.mubr.bf16.gmra.mrb[0].mxu0 %v1574
  %v1611 = vpop.f32.mrb[0].mxu0
  %v1612 = vadd.f32 0.0, %v1611
  %v1613 = vpop.f32.mrb[0].mxu0
  %v1614 = vpop.f32.mrb[0].mxu0
  %v1615 = vpop.f32.mrb[0].mxu0
  %1616 = vdwg.mxu0
  %v1617 = vadd.f32 %v1576, %v1612
  %v1618 = vxor.u32 %v1617, 2147483648
  %v1619 = vmul.f32 %v1618, 1.442695
  %v1620 = vpow.pop %v1619
  %v1621 = vadd.f32 %v1620, 1.0
  %v1622 = vrcp.pop %v1621
  %v1623 = vmul.f32 1.0, %v1622
  %v1624 = vtanh.pop %v1617
  %v1625 = vmul.f32 %v1623, %v1562
  %1627 = vrot.lane.b32.xlu0 %v1624, 32
  %v1628 = vpop.permute.xlu0 %1627
  %v1630 = vmul.f32 %v1623, %v1628
  %1632 = vrot.lane.b32.xlu0 %v1630, 32
  %v1633 = vpop.permute.xlu0 %1632
  %v1635 = vadd.f32 %v1625, %v1633
  %v1636 = vtanh.pop %v1635
  %1638 = vrot.lane.b32.xlu0 %v1636, 32
  %v1639 = vpop.permute.xlu0 %1638
  %v1641 = vmul.f32 %v1623, %v1639
  %1643 = vrot.lane.b32.xlu0 %v1641, 64
  %v1644 = vpop.permute.xlu0 %1643
  %v1646 = vsel %vm161, %v1644, 0.0
  %v1647 = vpack.c.bf16 %v1646, %v1646
  %s1648 = scalar_lea.vmem [#allocation3], 32
  %v1649 = vld [vmem:[%s1648] sm:$0xff]
  %1650 = vmatprep.subr.bf16.mxu0 0
  %1651 = vmatpush1.bf16.msra.mxu0 %v1342
  %1652 = vmatprep.subr.bf16.mxu0 0
  %1653 = vmatpush1.bf16.msra.mxu0 %v1343
  %1654 = vmatprep.subr.bf16.mxu0 0
  %1655 = vmatpush1.bf16.msra.mxu0 %v1344
  %1656 = vmatprep.subr.bf16.mxu0 0
  %1657 = vmatpush1.bf16.msra.mxu0 %v1345
  %1658 = vmatprep.subr.bf16.mxu0 0
  %1659 = vmatpush1.bf16.msra.mxu0 %v1346
  %1660 = vmatprep.subr.bf16.mxu0 0
  %1661 = vmatpush1.bf16.msra.mxu0 %v1347
  %1662 = vmatprep.subr.bf16.mxu0 0
  %1663 = vmatpush1.bf16.msra.mxu0 %v1348
  %1664 = vmatprep.subr.bf16.mxu0 0
  %1665 = vmatpush1.bf16.msra.mxu0 %v1349
  %1666 = vmatprep.subr.bf16.mxu0 0
  %1667 = vmatpush1.bf16.msra.mxu0 0
  %1668 = vmatprep.subr.bf16.mxu0 0
  %1669 = vmatpush1.bf16.msra.mxu0 0
  %1670 = vmatprep.subr.bf16.mxu0 0
  %1671 = vmatpush1.bf16.msra.mxu0 0
  %1672 = vmatprep.subr.bf16.mxu0 0
  %1673 = vmatpush1.bf16.msra.mxu0 0
  %1674 = vmatprep.subr.bf16.mxu0 0
  %1675 = vmatpush1.bf16.msra.mxu0 0
  %1676 = vmatprep.subr.bf16.mxu0 0
  %1677 = vmatpush1.bf16.msra.mxu0 0
  %1678 = vmatprep.subr.bf16.mxu0 0
  %1679 = vmatpush1.bf16.msra.mxu0 0
  %1680 = vmatprep.subr.bf16.mxu0 0
  %1681 = vmatpush1.bf16.msra.mxu0 0
  %1682 = vmatprep.mubr.bf16.mxu0 0
  %1683 = vmatmul.mubr.bf16.gmra.mrb[0].mxu0 %v1647
  %v1684 = vpop.f32.mrb[0].mxu0
  %v1685 = vadd.f32 0.0, %v1684
  %v1686 = vpop.f32.mrb[0].mxu0
  %v1687 = vpop.f32.mrb[0].mxu0
  %v1688 = vpop.f32.mrb[0].mxu0
  %1689 = vdwg.mxu0
  %v1690 = vadd.f32 %v1649, %v1685
  %v1691 = vxor.u32 %v1690, 2147483648
  %v1692 = vmul.f32 %v1691, 1.442695
  %v1693 = vpow.pop %v1692
  %v1694 = vadd.f32 %v1693, 1.0
  %v1695 = vrcp.pop %v1694
  %v1696 = vmul.f32 1.0, %v1695
  %v1697 = vtanh.pop %v1690
  %v1698 = vmul.f32 %v1696, %v1635
  %1700 = vrot.lane.b32.xlu0 %v1697, 32
  %v1701 = vpop.permute.xlu0 %1700
  %v1703 = vmul.f32 %v1696, %v1701
  %1705 = vrot.lane.b32.xlu0 %v1703, 32
  %v1706 = vpop.permute.xlu0 %1705
  %v1708 = vadd.f32 %v1698, %v1706
  %v1709 = vtanh.pop %v1708
  %1711 = vrot.lane.b32.xlu0 %v1709, 32
  %v1712 = vpop.permute.xlu0 %1711
  %v1714 = vmul.f32 %v1696, %v1712
  %1716 = vrot.lane.b32.xlu0 %v1714, 64
  %v1717 = vpop.permute.xlu0 %1716
  %v1719 = vsel %vm161, %v1717, 0.0
  %v1720 = vpack.c.bf16 %v1719, %v1719
  %s1721 = scalar_lea.vmem [#allocation3], 40
  %v1722 = vld [vmem:[%s1721] sm:$0xff]
  %1723 = vmatprep.subr.bf16.mxu0 0
  %1724 = vmatpush1.bf16.msra.mxu0 %v1342
  %1725 = vmatprep.subr.bf16.mxu0 0
  %1726 = vmatpush1.bf16.msra.mxu0 %v1343
  %1727 = vmatprep.subr.bf16.mxu0 0
  %1728 = vmatpush1.bf16.msra.mxu0 %v1344
  %1729 = vmatprep.subr.bf16.mxu0 0
  %1730 = vmatpush1.bf16.msra.mxu0 %v1345
  %1731 = vmatprep.subr.bf16.mxu0 0
  %1732 = vmatpush1.bf16.msra.mxu0 %v1346
  %1733 = vmatprep.subr.bf16.mxu0 0
  %1734 = vmatpush1.bf16.msra.mxu0 %v1347
  %1735 = vmatprep.subr.bf16.mxu0 0
  %1736 = vmatpush1.bf16.msra.mxu0 %v1348
  %1737 = vmatprep.subr.bf16.mxu0 0
  %1738 = vmatpush1.bf16.msra.mxu0 %v1349
  %1739 = vmatprep.subr.bf16.mxu0 0
  %1740 = vmatpush1.bf16.msra.mxu0 0
  %1741 = vmatprep.subr.bf16.mxu0 0
  %1742 = vmatpush1.bf16.msra.mxu0 0
  %1743 = vmatprep.subr.bf16.mxu0 0
  %1744 = vmatpush1.bf16.msra.mxu0 0
  %1745 = vmatprep.subr.bf16.mxu0 0
  %1746 = vmatpush1.bf16.msra.mxu0 0
  %1747 = vmatprep.subr.bf16.mxu0 0
  %1748 = vmatpush1.bf16.msra.mxu0 0
  %1749 = vmatprep.subr.bf16.mxu0 0
  %1750 = vmatpush1.bf16.msra.mxu0 0
  %1751 = vmatprep.subr.bf16.mxu0 0
  %1752 = vmatpush1.bf16.msra.mxu0 0
  %1753 = vmatprep.subr.bf16.mxu0 0
  %1754 = vmatpush1.bf16.msra.mxu0 0
  %1755 = vmatprep.mubr.bf16.mxu0 0
  %1756 = vmatmul.mubr.bf16.gmra.mrb[0].mxu0 %v1720
  %v1757 = vpop.f32.mrb[0].mxu0
  %v1758 = vadd.f32 0.0, %v1757
  %v1759 = vpop.f32.mrb[0].mxu0
  %v1760 = vpop.f32.mrb[0].mxu0
  %v1761 = vpop.f32.mrb[0].mxu0
  %1762 = vdwg.mxu0
  %v1763 = vadd.f32 %v1722, %v1758
  %v1764 = vxor.u32 %v1763, 2147483648
  %v1765 = vmul.f32 %v1764, 1.442695
  %v1766 = vpow.pop %v1765
  %v1767 = vadd.f32 %v1766, 1.0
  %v1768 = vrcp.pop %v1767
  %v1769 = vmul.f32 1.0, %v1768
  %v1770 = vtanh.pop %v1763
  %v1771 = vmul.f32 %v1769, %v1708
  %1773 = vrot.lane.b32.xlu0 %v1770, 32
  %v1774 = vpop.permute.xlu0 %1773
  %v1776 = vmul.f32 %v1769, %v1774
  %1778 = vrot.lane.b32.xlu0 %v1776, 32
  %v1779 = vpop.permute.xlu0 %1778
  %v1781 = vadd.f32 %v1771, %v1779
  %v1782 = vtanh.pop %v1781
  %1784 = vrot.lane.b32.xlu0 %v1782, 32
  %v1785 = vpop.permute.xlu0 %1784
  %v1787 = vmul.f32 %v1769, %v1785
  %1789 = vrot.lane.b32.xlu0 %v1787, 64
  %v1790 = vpop.permute.xlu0 %1789
  %v1792 = vsel %vm161, %v1790, 0.0
  %v1793 = vpack.c.bf16 %v1792, %v1792
  %s1794 = scalar_lea.vmem [#allocation3], 48
  %v1795 = vld [vmem:[%s1794] sm:$0xff]
  %1796 = vmatprep.subr.bf16.mxu0 0
  %1797 = vmatpush1.bf16.msra.mxu0 %v1342
  %1798 = vmatprep.subr.bf16.mxu0 0
  %1799 = vmatpush1.bf16.msra.mxu0 %v1343
  %1800 = vmatprep.subr.bf16.mxu0 0
  %1801 = vmatpush1.bf16.msra.mxu0 %v1344
  %1802 = vmatprep.subr.bf16.mxu0 0
  %1803 = vmatpush1.bf16.msra.mxu0 %v1345
  %1804 = vmatprep.subr.bf16.mxu0 0
  %1805 = vmatpush1.bf16.msra.mxu0 %v1346
  %1806 = vmatprep.subr.bf16.mxu0 0
  %1807 = vmatpush1.bf16.msra.mxu0 %v1347
  %1808 = vmatprep.subr.bf16.mxu0 0
  %1809 = vmatpush1.bf16.msra.mxu0 %v1348
  %1810 = vmatprep.subr.bf16.mxu0 0
  %1811 = vmatpush1.bf16.msra.mxu0 %v1349
  %1812 = vmatprep.subr.bf16.mxu0 0
  %1813 = vmatpush1.bf16.msra.mxu0 0
  %1814 = vmatprep.subr.bf16.mxu0 0
  %1815 = vmatpush1.bf16.msra.mxu0 0
  %1816 = vmatprep.subr.bf16.mxu0 0
  %1817 = vmatpush1.bf16.msra.mxu0 0
  %1818 = vmatprep.subr.bf16.mxu0 0
  %1819 = vmatpush1.bf16.msra.mxu0 0
  %1820 = vmatprep.subr.bf16.mxu0 0
  %1821 = vmatpush1.bf16.msra.mxu0 0
  %1822 = vmatprep.subr.bf16.mxu0 0
  %1823 = vmatpush1.bf16.msra.mxu0 0
  %1824 = vmatprep.subr.bf16.mxu0 0
  %1825 = vmatpush1.bf16.msra.mxu0 0
  %1826 = vmatprep.subr.bf16.mxu0 0
  %1827 = vmatpush1.bf16.msra.mxu0 0
  %1828 = vmatprep.mubr.bf16.mxu0 0
  %1829 = vmatmul.mubr.bf16.gmra.mrb[0].mxu0 %v1793
  %v1830 = vpop.f32.mrb[0].mxu0
  %v1831 = vadd.f32 0.0, %v1830
  %v1832 = vpop.f32.mrb[0].mxu0
  %v1833 = vpop.f32.mrb[0].mxu0
  %v1834 = vpop.f32.mrb[0].mxu0
  %1835 = vdwg.mxu0
  %v1836 = vadd.f32 %v1795, %v1831
  %v1837 = vxor.u32 %v1836, 2147483648
  %v1838 = vmul.f32 %v1837, 1.442695
  %v1839 = vpow.pop %v1838
  %v1840 = vadd.f32 %v1839, 1.0
  %v1841 = vrcp.pop %v1840
  %v1842 = vmul.f32 1.0, %v1841
  %v1843 = vtanh.pop %v1836
  %v1844 = vmul.f32 %v1842, %v1781
  %1846 = vrot.lane.b32.xlu0 %v1843, 32
  %v1847 = vpop.permute.xlu0 %1846
  %v1849 = vmul.f32 %v1842, %v1847
  %1851 = vrot.lane.b32.xlu0 %v1849, 32
  %v1852 = vpop.permute.xlu0 %1851
  %v1854 = vadd.f32 %v1844, %v1852
  %v1855 = vtanh.pop %v1854
  %1857 = vrot.lane.b32.xlu0 %v1855, 32
  %v1858 = vpop.permute.xlu0 %1857
  %v1860 = vmul.f32 %v1842, %v1858
  %1862 = vrot.lane.b32.xlu0 %v1860, 64
  %v1863 = vpop.permute.xlu0 %1862
  %v1865 = vsel %vm161, %v1863, 0.0
  %v1866 = vpack.c.bf16 %v1865, %v1865
  %s1867 = scalar_lea.vmem [#allocation3], 56
  %v1868 = vld [vmem:[%s1867] sm:$0xff]
  %1869 = vmatprep.subr.bf16.mxu0 0
  %1870 = vmatpush1.bf16.msra.mxu0 %v1342
  %1871 = vmatprep.subr.bf16.mxu0 0
  %1872 = vmatpush1.bf16.msra.mxu0 %v1343
  %1873 = vmatprep.subr.bf16.mxu0 0
  %1874 = vmatpush1.bf16.msra.mxu0 %v1344
  %1875 = vmatprep.subr.bf16.mxu0 0
  %1876 = vmatpush1.bf16.msra.mxu0 %v1345
  %1877 = vmatprep.subr.bf16.mxu0 0
  %1878 = vmatpush1.bf16.msra.mxu0 %v1346
  %1879 = vmatprep.subr.bf16.mxu0 0
  %1880 = vmatpush1.bf16.msra.mxu0 %v1347
  %1881 = vmatprep.subr.bf16.mxu0 0
  %1882 = vmatpush1.bf16.msra.mxu0 %v1348
  %1883 = vmatprep.subr.bf16.mxu0 0
  %1884 = vmatpush1.bf16.msra.mxu0 %v1349
  %1885 = vmatprep.subr.bf16.mxu0 0
  %1886 = vmatpush1.bf16.msra.mxu0 0
  %1887 = vmatprep.subr.bf16.mxu0 0
  %1888 = vmatpush1.bf16.msra.mxu0 0
  %1889 = vmatprep.subr.bf16.mxu0 0
  %1890 = vmatpush1.bf16.msra.mxu0 0
  %1891 = vmatprep.subr.bf16.mxu0 0
  %1892 = vmatpush1.bf16.msra.mxu0 0
  %1893 = vmatprep.subr.bf16.mxu0 0
  %1894 = vmatpush1.bf16.msra.mxu0 0
  %1895 = vmatprep.subr.bf16.mxu0 0
  %1896 = vmatpush1.bf16.msra.mxu0 0
  %1897 = vmatprep.subr.bf16.mxu0 0
  %1898 = vmatpush1.bf16.msra.mxu0 0
  %1899 = vmatprep.subr.bf16.mxu0 0
  %1900 = vmatpush1.bf16.msra.mxu0 0
  %1901 = vmatprep.mubr.bf16.mxu0 0
  %1902 = vmatmul.mubr.bf16.gmra.mrb[0].mxu0 %v1866
  %v1903 = vpop.f32.mrb[0].mxu0
  %v1904 = vadd.f32 0.0, %v1903
  %v1905 = vpop.f32.mrb[0].mxu0
  %v1906 = vpop.f32.mrb[0].mxu0
  %v1907 = vpop.f32.mrb[0].mxu0
  %1908 = vdwg.mxu0
  %v1909 = vadd.f32 %v1868, %v1904
  %v1910 = vxor.u32 %v1909, 2147483648
  %v1911 = vmul.f32 %v1910, 1.442695
  %v1912 = vpow.pop %v1911
  %v1913 = vadd.f32 %v1912, 1.0
  %v1914 = vrcp.pop %v1913
  %v1915 = vmul.f32 1.0, %v1914
  %v1916 = vtanh.pop %v1909
  %v1917 = vmul.f32 %v1915, %v1854
  %1919 = vrot.lane.b32.xlu0 %v1916, 32
  %v1920 = vpop.permute.xlu0 %1919
  %v1922 = vmul.f32 %v1915, %v1920
  %1924 = vrot.lane.b32.xlu0 %v1922, 32
  %v1925 = vpop.permute.xlu0 %1924
  %v1927 = vadd.f32 %v1917, %v1925
  %v1928 = vtanh.pop %v1927
  %1930 = vrot.lane.b32.xlu0 %v1928, 32
  %v1931 = vpop.permute.xlu0 %1930
  %v1933 = vmul.f32 %v1915, %v1931
  %1935 = vrot.lane.b32.xlu0 %v1933, 64
  %v1936 = vpop.permute.xlu0 %1935
  %v1938 = vsel %vm161, %v1936, 0.0
  %v1939 = vpack.c.bf16 %v1938, %v1938
  %v1940 = vld [vmem:[%s5] sm:$0xf]
  %v1941 = vld [vmem:[%s5 + $0x4] sm:$0xf]
  %v1942 = vld [vmem:[%s5 + $0x8] sm:$0xf]
  %v1943 = vld [vmem:[%s5 + $0xc] sm:$0xf]
  %v1944 = vld [vmem:[%s5 + $0x10] sm:$0xf]
  %v1945 = vld [vmem:[%s5 + $0x14] sm:$0xf]
  %v1946 = vld [vmem:[%s5 + $0x18] sm:$0xf]
  %v1947 = vld [vmem:[%s5 + $0x1c] sm:$0xf]
  %v1948 = vld [vmem:[%s5 + $0x20] sm:$0xf]
  %v1949 = vld [vmem:[%s5 + $0x24] sm:$0xf]
  %v1950 = vld [vmem:[%s5 + $0x28] sm:$0xf]
  %v1951 = vld [vmem:[%s5 + $0x2c] sm:$0xf]
  %v1952 = vld [vmem:[%s5 + $0x30] sm:$0xf]
  %v1953 = vld [vmem:[%s5 + $0x34] sm:$0xf]
  %v1954 = vld [vmem:[%s5 + $0x38] sm:$0xf]
  %v1955 = vld [vmem:[%s5 + $0x3c] sm:$0xf]
  %v1956 = vld [vmem:[%s6] sm:$0x1]
  %v1958 = vlaneseq
  %v1959 = vshrl.u32 %v1958, 7
  %v1960 = vsub.s32 0, %v1959
  %v1961 = vrot.slane %v1956, %v1960
  %v1979 = vunpack.c.l.b16 %v1940
  %v1980 = vunpack.c.l.b16 %v1941
  %v1981 = vunpack.c.l.b16 %v1942
  %v1982 = vunpack.c.l.b16 %v1943
  %v1983 = vunpack.c.l.b16 %v1944
  %v1984 = vunpack.c.l.b16 %v1945
  %v1985 = vunpack.c.l.b16 %v1946
  %v1986 = vunpack.c.l.b16 %v1947
  %v1987 = vunpack.c.l.b16 %v1948
  %v1988 = vunpack.c.l.b16 %v1949
  %v1989 = vunpack.c.l.b16 %v1950
  %v1990 = vunpack.c.l.b16 %v1951
  %v1991 = vunpack.c.l.b16 %v1952
  %v1992 = vunpack.c.l.b16 %v1953
  %v1993 = vunpack.c.l.b16 %v1954
  %v1994 = vunpack.c.l.b16 %v1955
  %v1995 = vpack.c.b16 %v1980, %v1979
  %v1996 = vpack.c.b16 %v1982, %v1981
  %v1997 = vpack.c.b16 %v1984, %v1983
  %v1998 = vpack.c.b16 %v1986, %v1985
  %v1999 = vpack.c.b16 %v1988, %v1987
  %v2000 = vpack.c.b16 %v1990, %v1989
  %v2001 = vpack.c.b16 %v1992, %v1991
  %v2002 = vpack.c.b16 %v1994, %v1993
  %2011 = vmatprep.subr.bf16.mxu0 0
  %2012 = vmatpush1.bf16.msra.mxu0 %v1995
  %2013 = vmatprep.subr.bf16.mxu0 0
  %2014 = vmatpush1.bf16.msra.mxu0 %v1996
  %2015 = vmatprep.subr.bf16.mxu0 0
  %2016 = vmatpush1.bf16.msra.mxu0 %v1997
  %2017 = vmatprep.subr.bf16.mxu0 0
  %2018 = vmatpush1.bf16.msra.mxu0 %v1998
  %2019 = vmatprep.subr.bf16.mxu0 0
  %2020 = vmatpush1.bf16.msra.mxu0 %v1999
  %2021 = vmatprep.subr.bf16.mxu0 0
  %2022 = vmatpush1.bf16.msra.mxu0 %v2000
  %2023 = vmatprep.subr.bf16.mxu0 0
  %2024 = vmatpush1.bf16.msra.mxu0 %v2001
  %2025 = vmatprep.subr.bf16.mxu0 0
  %2026 = vmatpush1.bf16.msra.mxu0 %v2002
  %2027 = vmatprep.subr.bf16.mxu0 0
  %2028 = vmatpush1.bf16.msra.mxu0 0
  %2029 = vmatprep.subr.bf16.mxu0 0
  %2030 = vmatpush1.bf16.msra.mxu0 0
  %2031 = vmatprep.subr.bf16.mxu0 0
  %2032 = vmatpush1.bf16.msra.mxu0 0
  %2033 = vmatprep.subr.bf16.mxu0 0
  %2034 = vmatpush1.bf16.msra.mxu0 0
  %2035 = vmatprep.subr.bf16.mxu0 0
  %2036 = vmatpush1.bf16.msra.mxu0 0
  %2037 = vmatprep.subr.bf16.mxu0 0
  %2038 = vmatpush1.bf16.msra.mxu0 0
  %2039 = vmatprep.subr.bf16.mxu0 0
  %2040 = vmatpush1.bf16.msra.mxu0 0
  %2041 = vmatprep.subr.bf16.mxu0 0
  %2042 = vmatpush1.bf16.msra.mxu0 0
  %2043 = vmatprep.mubr.bf16.mxu0 0
  %2044 = vmatmul.mubr.bf16.gmra.mrb[0].mxu0 %v1939
  %v2045 = vpop.f32.mrb[0].mxu0
  %v2046 = vadd.f32 %v1961, %v2045
  %v2047 = vpop.f32.mrb[0].mxu0
  %v2048 = vpop.f32.mrb[0].mxu0
  %v2049 = vpop.f32.mrb[0].mxu0
  %2050 = vdwg.mxu0
  %2051 = vst [vmem:[%s7] sm:$0xff] %v2046
  // Predicated region
  $region30: #{stock_lstm_forward.1} parent=0 // pred_check
    _
  $region31: #{stock_lstm_forward.1} parent=0 // pred_check_branch
    %2053 = sbr.rel (0) target = $region33
  $region32: #{stock_lstm_forward.1} parent=0 // pred_region
    _
  $region33: #{stock_lstm_forward.1} parent=0 // pred_fallthru
    _
  // Predicated region
  $region34: #{stock_lstm_forward.1} parent=0 // pred_check
    _
  $region35: #{stock_lstm_forward.1} parent=0 // pred_check_branch
    %2055 = sbr.rel (0) target = $region37
  $region36: #{stock_lstm_forward.1} parent=0 // pred_region
    _
  $region37: #{stock_lstm_forward.1} parent=0 // pred_fallthru
    _

</llo_original>
